<compile_context>
chip_gen: v5e
topology: v5e:2x2
jax: 0.10.0
libtpu: 0.0.40
codegen_flags: <defaults>
</compile_context>

<pallas_src>
import functools

import numpy as np
import jax
import jax.numpy as jnp
from jax import lax
from jax.experimental import pallas as pl
from jax.experimental.pallas import tpu as pltpu

CPAD = 32                               # channel padding inside the lane dim (12 -> 32)
W1OUT, W2OUT, W3OUT = 8, 4, 4           # conv output widths for 16x16 input
LANES1 = W1OUT * CPAD                   # 256
LANES2 = W2OUT * CPAD                   # 128
LANES3 = W3OUT * CPAD                   # 128
K1 = 256                                # conv1 patch features: 5*16*3 = 240 -> 256
NCLS_PAD = 128                          # padded class dim (lane-dense output)


# ------------------------------ fused kernel ------------------------------- #
def _lenet_kernel(l1_ref, b1_ref, b2_ref, b3_ref, bfc_ref,
                  bias1_ref, bias2_ref, bias3_ref, biasfc_ref,
                  out_ref, a1_ref, a2_ref, a3_ref, *, nb):
    f32 = jnp.float32

    def sigmoid(z):
        # exp runs on the EUP; the divide lowers to a refined EUP reciprocal.
        return 1.0 / (1.0 + jnp.exp(-z))

    # ---- conv1: one matmul over wrapper-packed patch rows ------------------ #
    z1 = jnp.dot(l1_ref[...], b1_ref[...], preferred_element_type=f32)
    a1 = sigmoid(z1 + bias1_ref[...])
    # zero rows that are H-padding / parity-padding of conv2's input layout
    r1 = lax.broadcasted_iota(jnp.int32, (20 * nb, LANES1), 0)
    valid1 = ((r1 >= 3 * nb) & (r1 < 7 * nb)) | ((r1 >= 13 * nb) & (r1 < 17 * nb))
    a1_ref[...] = jnp.where(valid1, a1, 0.0)

    # ---- conv2 (stride 2): 5 kh-taps, each a contiguous static row slice --- #
    acc2 = jnp.zeros((8 * nb, LANES2), f32)
    for kh in range(5):
        start = (kh % 2) * (10 * nb) + (kh // 2) * nb
        acc2 += jnp.dot(a1_ref[start:start + 8 * nb, :], b2_ref[kh],
                        preferred_element_type=f32)
    a2 = sigmoid(acc2 + bias2_ref[...])
    r2 = lax.broadcasted_iota(jnp.int32, (8 * nb, LANES2), 0)
    valid2 = (r2 >= 2 * nb) & (r2 < 6 * nb)
    a2_ref[...] = jnp.where(valid2, a2, 0.0)

    # ---- conv3 (stride 1): 5 kh-taps ---------------------------------------- #
    acc3 = jnp.zeros((4 * nb, LANES3), f32)
    for kh in range(5):
        acc3 += jnp.dot(a2_ref[kh * nb:kh * nb + 4 * nb, :], b3_ref[kh],
                        preferred_element_type=f32)
    a3_ref[...] = sigmoid(acc3 + bias3_ref[...])

    # ---- final linear (PyTorch NCHW-flatten order folded into weights) ------ #
    accf = jnp.zeros((nb, NCLS_PAD), f32)
    for h3 in range(4):
        accf += jnp.dot(a3_ref[h3 * nb:(h3 + 1) * nb, :], bfc_ref[h3],
                        preferred_element_type=f32)
    out_ref[...] = accf + biasfc_ref[...]


# --------------------- one-time parameter preprocessing -------------------- #
def preprocess_params(params):
    """Hoist all weight reshuffling out of the per-forward hot path."""
    w1 = np.asarray(params["conv1_w"], np.float32)   # (12, 3, 5, 5) OIHW
    w2 = np.asarray(params["conv2_w"], np.float32)   # (12, 12, 5, 5)
    w3 = np.asarray(params["conv3_w"], np.float32)   # (12, 12, 5, 5)
    fw = np.asarray(params["fc_w"], np.float32)      # (ncls, 192)
    b1 = np.asarray(params["conv1_b"], np.float32)
    b2 = np.asarray(params["conv2_b"], np.float32)
    b3 = np.asarray(params["conv3_b"], np.float32)
    fb = np.asarray(params["fc_b"], np.float32)
    assert w1.shape == (12, 3, 5, 5) and w2.shape == (12, 12, 5, 5)
    assert w3.shape == (12, 12, 5, 5) and fw.shape[1] == 12 * 4 * 4
    ncls = fw.shape[0]
    assert ncls <= NCLS_PAD

    # B1: rows (kh, w_in, c_in) -> cols (w1_out, c_out); kw = w_in - 2*w1_out + 2
    B1 = np.zeros((K1, LANES1), np.float32)
    for kh in range(5):
        for wx in range(16):
            for wo in range(W1OUT):
                kw = wx - 2 * wo + 2
                if 0 <= kw < 5:
                    r = (kh * 16 + wx) * 3
                    B1[r:r + 3, wo * CPAD:wo * CPAD + 12] = w1[:, :, kh, kw].T

    # B2[kh]: rows (w1, c_in) -> cols (w2, c_out); kw = w1 - 2*w2 + 2 (stride 2)
    B2 = np.zeros((5, LANES1, LANES2), np.float32)
    for kh in range(5):
        for wi in range(W1OUT):
            for wo in range(W2OUT):
                kw = wi - 2 * wo + 2
                if 0 <= kw < 5:
                    B2[kh, wi * CPAD:wi * CPAD + 12,
                       wo * CPAD:wo * CPAD + 12] = w2[:, :, kh, kw].T

    # B3[kh]: rows (w2, c_in) -> cols (w3, c_out); kw = w2 - w3 + 2 (stride 1)
    B3 = np.zeros((5, LANES2, LANES3), np.float32)
    for kh in range(5):
        for wi in range(W2OUT):
            for wo in range(W3OUT):
                kw = wi - wo + 2
                if 0 <= kw < 5:
                    B3[kh, wi * CPAD:wi * CPAD + 12,
                       wo * CPAD:wo * CPAD + 12] = w3[:, :, kh, kw].T

    # Bfc[h3]: rows (w3, c) -> cols (class); PyTorch flatten index = c*16+h*4+w
    fw4 = fw.reshape(ncls, 12, 4, 4)                 # (j, c, h3, w3)
    Bfc = np.zeros((4, LANES3, NCLS_PAD), np.float32)
    for h3 in range(4):
        for wo in range(4):
            Bfc[h3, wo * CPAD:wo * CPAD + 12, :ncls] = fw4[:, :, h3, wo].T

    b1r = np.zeros((1, LANES1), np.float32)
    b2r = np.zeros((1, LANES2), np.float32)
    b3r = np.zeros((1, LANES3), np.float32)
    bfr = np.zeros((1, NCLS_PAD), np.float32)
    for w in range(W1OUT):
        b1r[0, w * CPAD:w * CPAD + 12] = b1
    for w in range(W2OUT):
        b2r[0, w * CPAD:w * CPAD + 12] = b2
    for w in range(W3OUT):
        b3r[0, w * CPAD:w * CPAD + 12] = b3
    bfr[0, :ncls] = fb

    arrs = dict(B1=B1, B2=B2, B3=B3, Bfc=Bfc, b1r=b1r, b2r=b2r, b3r=b3r, bfcr=bfr)
    return {k: jnp.asarray(v) for k, v in arrs.items()}


# -------------------- per-forward input packing (XLA glue) ------------------ #
def _make_conv1_rows(x_nchw):
    """Pack conv1's input into the (parity, h, batch)-row / (kh, w, c)-col layout.

    Row (p, g, n) holds the 5x16x3 input slab for conv1 output row
    h1 = 2*(g-3)+p (zeros if h1 is out of range); columns padded 240 -> 256.
    """
    nb, c, h, w = x_nchw.shape
    assert (c, h, w) == (3, 16, 16), "kernel is specialized to 3x16x16 inputs"
    xp = jnp.pad(x_nchw, ((0, 0), (0, 0), (2, 2), (0, 0)))        # H-pad by 2
    p = np.arange(2)[:, None]
    g = np.arange(10)[None, :]
    h1 = 2 * (g - 3) + p                                          # (2, 10)
    valid = (h1 >= 0) & (h1 < 8)
    hx = 2 * np.clip(h1, 0, 7)[:, :, None] + np.arange(5)[None, None, :]
    rows = xp[:, :, hx, :]                                        # (N,3,2,10,5,16)
    rows = jnp.transpose(rows, (2, 3, 0, 4, 5, 1))                # (2,10,N,5,16,3)
    rows = rows * jnp.asarray(valid, x_nchw.dtype)[:, :, None, None, None, None]
    rows = rows.reshape(2 * 10 * nb, 5 * 16 * 3)                  # (20N, 240)
    return jnp.pad(rows, ((0, 0), (0, K1 - 5 * 16 * 3)))          # (20N, 256)


# ------------------------------- forward ----------------------------------- #
@functools.partial(jax.jit, static_argnames=("num_classes",))
def lenet_forward(prepped, x_nchw, *, num_classes):
    nb = x_nchw.shape[0]
    l1 = _make_conv1_rows(x_nchw)
    vmem = pl.BlockSpec(memory_space=pltpu.MemorySpace.VMEM)
    out = pl.pallas_call(
        functools.partial(_lenet_kernel, nb=nb),
        out_shape=jax.ShapeDtypeStruct((nb, NCLS_PAD), jnp.float32),
        in_specs=[vmem] * 9,
        out_specs=vmem,
        scratch_shapes=[
            pltpu.VMEM((20 * nb, LANES1), jnp.float32),   # conv1 activations
            pltpu.VMEM((8 * nb, LANES2), jnp.float32),    # conv2 activations
            pltpu.VMEM((4 * nb, LANES3), jnp.float32),    # conv3 activations
        ],
    )(l1, prepped["B1"], prepped["B2"], prepped["B3"], prepped["Bfc"],
      prepped["b1r"], prepped["b2r"], prepped["b3r"], prepped["bfcr"])
    return out[:, :num_classes]


# ------------------------------ params / ref -------------------------------- #
def init_lenet_params(key, number_of_classes, in_features):
    ks = jax.random.split(key, 8)
    u = lambda k, shape: jax.random.uniform(k, shape, jnp.float32, -0.5, 0.5)
    return {
        "conv1_w": u(ks[0], (12, 3, 5, 5)),  "conv1_b": u(ks[1], (12,)),
        "conv2_w": u(ks[2], (12, 12, 5, 5)), "conv2_b": u(ks[3], (12,)),
        "conv3_w": u(ks[4], (12, 12, 5, 5)), "conv3_b": u(ks[5], (12,)),
        "fc_w":    u(ks[6], (number_of_classes, in_features)),
        "fc_b":    u(ks[7], (number_of_classes,)),
    }


def _ref_forward(params, x_nchw):
    def conv(x, w, b, stride):
        y = jax.lax.conv_general_dilated(
            x, w, window_strides=(stride, stride), padding=((2, 2), (2, 2)),
            dimension_numbers=("NCHW", "OIHW", "NCHW"))
        return jax.nn.sigmoid(y + b[None, :, None, None])

    x = conv(x_nchw, params["conv1_w"], params["conv1_b"], 2)
    x = conv(x, params["conv2_w"], params["conv2_b"], 2)
    x = conv(x, params["conv3_w"], params["conv3_b"], 1)
    flat = x.reshape(x.shape[0], -1)
    return flat @ params["fc_w"].T + params["fc_b"]


if __name__ == "__main__":
    # batch=2, 3 input channels, 16x16 spatial -> body output 12x4x4.
    B, C, H, W = 2, 3, 16, 16
    number_of_classes, in_features = 10, 12 * 4 * 4

    key = jax.random.PRNGKey(0)
    k_params, k_x = jax.random.split(key)
    params = init_lenet_params(k_params, number_of_classes, in_features)
    x = jax.random.normal(k_x, (B, C, H, W), dtype=jnp.float32)

    prepped = preprocess_params(params)                      # one-time hoist
    out = jax.block_until_ready(
        lenet_forward(prepped, x, num_classes=number_of_classes))
    assert out.shape == (B, number_of_classes), out.shape

    ref = jax.block_until_ready(_ref_forward(params, x))
    assert jnp.allclose(out, ref, rtol=1e-2, atol=1e-2), (
        f"max abs diff {jnp.max(jnp.abs(out - ref))}")

    print("KERNEL_OK")
</pallas_src>

<mosaic_0001>
module attributes {stable_mosaic.version = 11 : i64} {
  func.func @_lenet_kernel(%arg0: memref<40x256xf32, #tpu.memory_space<vmem>>, %arg1: memref<256x256xf32, #tpu.memory_space<vmem>>, %arg2: memref<5x256x128xf32, #tpu.memory_space<vmem>>, %arg3: memref<5x128x128xf32, #tpu.memory_space<vmem>>, %arg4: memref<4x128x128xf32, #tpu.memory_space<vmem>>, %arg5: memref<1x256xf32, #tpu.memory_space<vmem>>, %arg6: memref<1x128xf32, #tpu.memory_space<vmem>>, %arg7: memref<1x128xf32, #tpu.memory_space<vmem>>, %arg8: memref<1x128xf32, #tpu.memory_space<vmem>>, %arg9: memref<2x128xf32, #tpu.memory_space<vmem>>, %arg10: memref<40x256xf32, #tpu.memory_space<vmem>>, %arg11: memref<16x128xf32, #tpu.memory_space<vmem>>, %arg12: memref<8x128xf32, #tpu.memory_space<vmem>>) attributes {dimension_semantics = [], scalar_prefetch = 0 : i64, scratch_operands = 3 : i64, tpu.core_type = #tpu.core_type<tc>} {
    %c0 = arith.constant 0 : index
    %c0_0 = arith.constant 0 : index
    %0 = vector.load %arg0[%c0, %c0_0] : memref<40x256xf32, #tpu.memory_space<vmem>>, vector<40x256xf32>
    %c0_1 = arith.constant 0 : index
    %c0_2 = arith.constant 0 : index
    %1 = vector.load %arg1[%c0_1, %c0_2] : memref<256x256xf32, #tpu.memory_space<vmem>>, vector<256x256xf32>
    %cst = arith.constant dense<0.000000e+00> : vector<40x256xf32>
    %2 = tpu.matmul %0, %1, %cst {dimension_numbers = #tpu.dot_dimension_numbers<[1], [0], [0], [1], [0, 0, 1, 1], [], []>} : vector<40x256xf32>, vector<256x256xf32>, vector<40x256xf32> -> vector<40x256xf32>
    %c0_3 = arith.constant 0 : index
    %c0_4 = arith.constant 0 : index
    %3 = vector.load %arg5[%c0_3, %c0_4] : memref<1x256xf32, #tpu.memory_space<vmem>>, vector<1x256xf32>
    %4 = vector.broadcast %3 : vector<1x256xf32> to vector<40x256xf32>
    %5 = arith.addf %2, %4 : vector<40x256xf32>
    %cst_5 = arith.constant 0.000000e+00 : f32
    %6 = vector.broadcast %cst_5 : f32 to vector<40x256xf32>
    %7 = arith.subf %6, %5 : vector<40x256xf32>
    %8 = math.exp %7 : vector<40x256xf32>
    %cst_6 = arith.constant 1.000000e+00 : f32
    %9 = vector.broadcast %cst_6 : f32 to vector<40x256xf32>
    %10 = arith.addf %9, %8 : vector<40x256xf32>
    %cst_7 = arith.constant 1.000000e+00 : f32
    %11 = vector.broadcast %cst_7 : f32 to vector<40x256xf32>
    %12 = arith.divf %11, %10 : vector<40x256xf32>
    %13 = tpu.iota {dimensions = array<i32: 0>} : vector<40x256xi32>
    %c6_i32 = arith.constant 6 : i32
    %14 = vector.broadcast %c6_i32 : i32 to vector<40x256xi32>
    %15 = arith.cmpi sge, %13, %14 : vector<40x256xi32>
    %c14_i32 = arith.constant 14 : i32
    %16 = vector.broadcast %c14_i32 : i32 to vector<40x256xi32>
    %17 = arith.cmpi slt, %13, %16 : vector<40x256xi32>
    %18 = arith.andi %15, %17 : vector<40x256xi1>
    %c26_i32 = arith.constant 26 : i32
    %19 = vector.broadcast %c26_i32 : i32 to vector<40x256xi32>
    %20 = arith.cmpi sge, %13, %19 : vector<40x256xi32>
    %c34_i32 = arith.constant 34 : i32
    %21 = vector.broadcast %c34_i32 : i32 to vector<40x256xi32>
    %22 = arith.cmpi slt, %13, %21 : vector<40x256xi32>
    %23 = arith.andi %20, %22 : vector<40x256xi1>
    %24 = arith.ori %18, %23 : vector<40x256xi1>
    %cst_8 = arith.constant 0.000000e+00 : f32
    %25 = vector.broadcast %cst_8 : f32 to vector<40x256xf32>
    %26 = arith.select %24, %12, %25 : vector<40x256xi1>, vector<40x256xf32>
    %c0_9 = arith.constant 0 : index
    %c0_10 = arith.constant 0 : index
    %27 = vector.load %arg10[%c0_9, %c0_10] : memref<40x256xf32, #tpu.memory_space<vmem>>, vector<40x256xf32>
    tpu.vector_store %arg10[%c0_9, %c0_10], %26 {strides = array<i32>} : memref<40x256xf32, #tpu.memory_space<vmem>>, vector<40x256xf32>,
    %cst_11 = arith.constant 0.000000e+00 : f32
    %28 = vector.broadcast %cst_11 : f32 to vector<16x128xf32>
    %c0_12 = arith.constant 0 : index
    %c0_13 = arith.constant 0 : index
    %29 = vector.load %arg10[%c0_12, %c0_13] : memref<40x256xf32, #tpu.memory_space<vmem>>, vector<16x256xf32>
    %c0_14 = arith.constant 0 : index
    %c0_15 = arith.constant 0 : index
    %c0_16 = arith.constant 0 : index
    %30 = vector.load %arg2[%c0_14, %c0_15, %c0_16] : memref<5x256x128xf32, #tpu.memory_space<vmem>>, vector<1x256x128xf32>
    %31 = vector.shape_cast %30 : vector<1x256x128xf32> to vector<256x128xf32>
    %cst_17 = arith.constant dense<0.000000e+00> : vector<16x128xf32>
    %32 = tpu.matmul %29, %31, %cst_17 {dimension_numbers = #tpu.dot_dimension_numbers<[1], [0], [0], [1], [0, 0, 1, 1], [], []>} : vector<16x256xf32>, vector<256x128xf32>, vector<16x128xf32> -> vector<16x128xf32>
    %33 = arith.addf %28, %32 : vector<16x128xf32>
    %c20 = arith.constant 20 : index
    %c0_18 = arith.constant 0 : index
    %34 = vector.load %arg10[%c20, %c0_18] : memref<40x256xf32, #tpu.memory_space<vmem>>, vector<16x256xf32>
    %c1 = arith.constant 1 : index
    %c0_19 = arith.constant 0 : index
    %c0_20 = arith.constant 0 : index
    %35 = vector.load %arg2[%c1, %c0_19, %c0_20] : memref<5x256x128xf32, #tpu.memory_space<vmem>>, vector<1x256x128xf32>
    %36 = vector.shape_cast %35 : vector<1x256x128xf32> to vector<256x128xf32>
    %cst_21 = arith.constant dense<0.000000e+00> : vector<16x128xf32>
    %37 = tpu.matmul %34, %36, %cst_21 {dimension_numbers = #tpu.dot_dimension_numbers<[1], [0], [0], [1], [0, 0, 1, 1], [], []>} : vector<16x256xf32>, vector<256x128xf32>, vector<16x128xf32> -> vector<16x128xf32>
    %38 = arith.addf %33, %37 : vector<16x128xf32>
    %c2 = arith.constant 2 : index
    %c0_22 = arith.constant 0 : index
    %39 = vector.load %arg10[%c2, %c0_22] : memref<40x256xf32, #tpu.memory_space<vmem>>, vector<16x256xf32>
    %c2_23 = arith.constant 2 : index
    %c0_24 = arith.constant 0 : index
    %c0_25 = arith.constant 0 : index
    %40 = vector.load %arg2[%c2_23, %c0_24, %c0_25] : memref<5x256x128xf32, #tpu.memory_space<vmem>>, vector<1x256x128xf32>
    %41 = vector.shape_cast %40 : vector<1x256x128xf32> to vector<256x128xf32>
    %cst_26 = arith.constant dense<0.000000e+00> : vector<16x128xf32>
    %42 = tpu.matmul %39, %41, %cst_26 {dimension_numbers = #tpu.dot_dimension_numbers<[1], [0], [0], [1], [0, 0, 1, 1], [], []>} : vector<16x256xf32>, vector<256x128xf32>, vector<16x128xf32> -> vector<16x128xf32>
    %43 = arith.addf %38, %42 : vector<16x128xf32>
    %c22 = arith.constant 22 : index
    %c0_27 = arith.constant 0 : index
    %44 = vector.load %arg10[%c22, %c0_27] : memref<40x256xf32, #tpu.memory_space<vmem>>, vector<16x256xf32>
    %c3 = arith.constant 3 : index
    %c0_28 = arith.constant 0 : index
    %c0_29 = arith.constant 0 : index
    %45 = vector.load %arg2[%c3, %c0_28, %c0_29] : memref<5x256x128xf32, #tpu.memory_space<vmem>>, vector<1x256x128xf32>
    %46 = vector.shape_cast %45 : vector<1x256x128xf32> to vector<256x128xf32>
    %cst_30 = arith.constant dense<0.000000e+00> : vector<16x128xf32>
    %47 = tpu.matmul %44, %46, %cst_30 {dimension_numbers = #tpu.dot_dimension_numbers<[1], [0], [0], [1], [0, 0, 1, 1], [], []>} : vector<16x256xf32>, vector<256x128xf32>, vector<16x128xf32> -> vector<16x128xf32>
    %48 = arith.addf %43, %47 : vector<16x128xf32>
    %c4 = arith.constant 4 : index
    %c0_31 = arith.constant 0 : index
    %49 = vector.load %arg10[%c4, %c0_31] : memref<40x256xf32, #tpu.memory_space<vmem>>, vector<16x256xf32>
    %c4_32 = arith.constant 4 : index
    %c0_33 = arith.constant 0 : index
    %c0_34 = arith.constant 0 : index
    %50 = vector.load %arg2[%c4_32, %c0_33, %c0_34] : memref<5x256x128xf32, #tpu.memory_space<vmem>>, vector<1x256x128xf32>
    %51 = vector.shape_cast %50 : vector<1x256x128xf32> to vector<256x128xf32>
    %cst_35 = arith.constant dense<0.000000e+00> : vector<16x128xf32>
    %52 = tpu.matmul %49, %51, %cst_35 {dimension_numbers = #tpu.dot_dimension_numbers<[1], [0], [0], [1], [0, 0, 1, 1], [], []>} : vector<16x256xf32>, vector<256x128xf32>, vector<16x128xf32> -> vector<16x128xf32>
    %53 = arith.addf %48, %52 : vector<16x128xf32>
    %c0_36 = arith.constant 0 : index
    %c0_37 = arith.constant 0 : index
    %54 = vector.load %arg6[%c0_36, %c0_37] : memref<1x128xf32, #tpu.memory_space<vmem>>, vector<1x128xf32>
    %55 = vector.broadcast %54 : vector<1x128xf32> to vector<16x128xf32>
    %56 = arith.addf %53, %55 : vector<16x128xf32>
    %cst_38 = arith.constant 0.000000e+00 : f32
    %57 = vector.broadcast %cst_38 : f32 to vector<16x128xf32>
    %58 = arith.subf %57, %56 : vector<16x128xf32>
    %59 = math.exp %58 : vector<16x128xf32>
    %cst_39 = arith.constant 1.000000e+00 : f32
    %60 = vector.broadcast %cst_39 : f32 to vector<16x128xf32>
    %61 = arith.addf %60, %59 : vector<16x128xf32>
    %cst_40 = arith.constant 1.000000e+00 : f32
    %62 = vector.broadcast %cst_40 : f32 to vector<16x128xf32>
    %63 = arith.divf %62, %61 : vector<16x128xf32>
    %64 = tpu.iota {dimensions = array<i32: 0>} : vector<16x128xi32>
    %c4_i32 = arith.constant 4 : i32
    %65 = vector.broadcast %c4_i32 : i32 to vector<16x128xi32>
    %66 = arith.cmpi sge, %64, %65 : vector<16x128xi32>
    %c12_i32 = arith.constant 12 : i32
    %67 = vector.broadcast %c12_i32 : i32 to vector<16x128xi32>
    %68 = arith.cmpi slt, %64, %67 : vector<16x128xi32>
    %69 = arith.andi %66, %68 : vector<16x128xi1>
    %cst_41 = arith.constant 0.000000e+00 : f32
    %70 = vector.broadcast %cst_41 : f32 to vector<16x128xf32>
    %71 = arith.select %69, %63, %70 : vector<16x128xi1>, vector<16x128xf32>
    %c0_42 = arith.constant 0 : index
    %c0_43 = arith.constant 0 : index
    %72 = vector.load %arg11[%c0_42, %c0_43] : memref<16x128xf32, #tpu.memory_space<vmem>>, vector<16x128xf32>
    tpu.vector_store %arg11[%c0_42, %c0_43], %71 {strides = array<i32>} : memref<16x128xf32, #tpu.memory_space<vmem>>, vector<16x128xf32>,
    %cst_44 = arith.constant 0.000000e+00 : f32
    %73 = vector.broadcast %cst_44 : f32 to vector<8x128xf32>
    %c0_45 = arith.constant 0 : index
    %c0_46 = arith.constant 0 : index
    %74 = vector.load %arg11[%c0_45, %c0_46] : memref<16x128xf32, #tpu.memory_space<vmem>>, vector<8x128xf32>
    %c0_47 = arith.constant 0 : index
    %c0_48 = arith.constant 0 : index
    %c0_49 = arith.constant 0 : index
    %75 = vector.load %arg3[%c0_47, %c0_48, %c0_49] : memref<5x128x128xf32, #tpu.memory_space<vmem>>, vector<1x128x128xf32>
    %76 = vector.shape_cast %75 : vector<1x128x128xf32> to vector<128x128xf32>
    %cst_50 = arith.constant dense<0.000000e+00> : vector<8x128xf32>
    %77 = tpu.matmul %74, %76, %cst_50 {dimension_numbers = #tpu.dot_dimension_numbers<[1], [0], [0], [1], [0, 0, 1, 1], [], []>} : vector<8x128xf32>, vector<128x128xf32>, vector<8x128xf32> -> vector<8x128xf32>
    %78 = arith.addf %73, %77 : vector<8x128xf32>
    %c2_51 = arith.constant 2 : index
    %c0_52 = arith.constant 0 : index
    %79 = vector.load %arg11[%c2_51, %c0_52] : memref<16x128xf32, #tpu.memory_space<vmem>>, vector<8x128xf32>
    %c1_53 = arith.constant 1 : index
    %c0_54 = arith.constant 0 : index
    %c0_55 = arith.constant 0 : index
    %80 = vector.load %arg3[%c1_53, %c0_54, %c0_55] : memref<5x128x128xf32, #tpu.memory_space<vmem>>, vector<1x128x128xf32>
    %81 = vector.shape_cast %80 : vector<1x128x128xf32> to vector<128x128xf32>
    %cst_56 = arith.constant dense<0.000000e+00> : vector<8x128xf32>
    %82 = tpu.matmul %79, %81, %cst_56 {dimension_numbers = #tpu.dot_dimension_numbers<[1], [0], [0], [1], [0, 0, 1, 1], [], []>} : vector<8x128xf32>, vector<128x128xf32>, vector<8x128xf32> -> vector<8x128xf32>
    %83 = arith.addf %78, %82 : vector<8x128xf32>
    %c4_57 = arith.constant 4 : index
    %c0_58 = arith.constant 0 : index
    %84 = vector.load %arg11[%c4_57, %c0_58] : memref<16x128xf32, #tpu.memory_space<vmem>>, vector<8x128xf32>
    %c2_59 = arith.constant 2 : index
    %c0_60 = arith.constant 0 : index
    %c0_61 = arith.constant 0 : index
    %85 = vector.load %arg3[%c2_59, %c0_60, %c0_61] : memref<5x128x128xf32, #tpu.memory_space<vmem>>, vector<1x128x128xf32>
    %86 = vector.shape_cast %85 : vector<1x128x128xf32> to vector<128x128xf32>
    %cst_62 = arith.constant dense<0.000000e+00> : vector<8x128xf32>
    %87 = tpu.matmul %84, %86, %cst_62 {dimension_numbers = #tpu.dot_dimension_numbers<[1], [0], [0], [1], [0, 0, 1, 1], [], []>} : vector<8x128xf32>, vector<128x128xf32>, vector<8x128xf32> -> vector<8x128xf32>
    %88 = arith.addf %83, %87 : vector<8x128xf32>
    %c6 = arith.constant 6 : index
    %c0_63 = arith.constant 0 : index
    %89 = vector.load %arg11[%c6, %c0_63] : memref<16x128xf32, #tpu.memory_space<vmem>>, vector<8x128xf32>
    %c3_64 = arith.constant 3 : index
    %c0_65 = arith.constant 0 : index
    %c0_66 = arith.constant 0 : index
    %90 = vector.load %arg3[%c3_64, %c0_65, %c0_66] : memref<5x128x128xf32, #tpu.memory_space<vmem>>, vector<1x128x128xf32>
    %91 = vector.shape_cast %90 : vector<1x128x128xf32> to vector<128x128xf32>
    %cst_67 = arith.constant dense<0.000000e+00> : vector<8x128xf32>
    %92 = tpu.matmul %89, %91, %cst_67 {dimension_numbers = #tpu.dot_dimension_numbers<[1], [0], [0], [1], [0, 0, 1, 1], [], []>} : vector<8x128xf32>, vector<128x128xf32>, vector<8x128xf32> -> vector<8x128xf32>
    %93 = arith.addf %88, %92 : vector<8x128xf32>
    %c8 = arith.constant 8 : index
    %c0_68 = arith.constant 0 : index
    %94 = vector.load %arg11[%c8, %c0_68] : memref<16x128xf32, #tpu.memory_space<vmem>>, vector<8x128xf32>
    %c4_69 = arith.constant 4 : index
    %c0_70 = arith.constant 0 : index
    %c0_71 = arith.constant 0 : index
    %95 = vector.load %arg3[%c4_69, %c0_70, %c0_71] : memref<5x128x128xf32, #tpu.memory_space<vmem>>, vector<1x128x128xf32>
    %96 = vector.shape_cast %95 : vector<1x128x128xf32> to vector<128x128xf32>
    %cst_72 = arith.constant dense<0.000000e+00> : vector<8x128xf32>
    %97 = tpu.matmul %94, %96, %cst_72 {dimension_numbers = #tpu.dot_dimension_numbers<[1], [0], [0], [1], [0, 0, 1, 1], [], []>} : vector<8x128xf32>, vector<128x128xf32>, vector<8x128xf32> -> vector<8x128xf32>
    %98 = arith.addf %93, %97 : vector<8x128xf32>
    %c0_73 = arith.constant 0 : index
    %c0_74 = arith.constant 0 : index
    %99 = vector.load %arg7[%c0_73, %c0_74] : memref<1x128xf32, #tpu.memory_space<vmem>>, vector<1x128xf32>
    %100 = vector.broadcast %99 : vector<1x128xf32> to vector<8x128xf32>
    %101 = arith.addf %98, %100 : vector<8x128xf32>
    %cst_75 = arith.constant 0.000000e+00 : f32
    %102 = vector.broadcast %cst_75 : f32 to vector<8x128xf32>
    %103 = arith.subf %102, %101 : vector<8x128xf32>
    %104 = math.exp %103 : vector<8x128xf32>
    %cst_76 = arith.constant 1.000000e+00 : f32
    %105 = vector.broadcast %cst_76 : f32 to vector<8x128xf32>
    %106 = arith.addf %105, %104 : vector<8x128xf32>
    %cst_77 = arith.constant 1.000000e+00 : f32
    %107 = vector.broadcast %cst_77 : f32 to vector<8x128xf32>
    %108 = arith.divf %107, %106 : vector<8x128xf32>
    %c0_78 = arith.constant 0 : index
    %c0_79 = arith.constant 0 : index
    %109 = vector.load %arg12[%c0_78, %c0_79] : memref<8x128xf32, #tpu.memory_space<vmem>>, vector<8x128xf32>
    tpu.vector_store %arg12[%c0_78, %c0_79], %108 {strides = array<i32>} : memref<8x128xf32, #tpu.memory_space<vmem>>, vector<8x128xf32>,
    %cst_80 = arith.constant 0.000000e+00 : f32
    %110 = vector.broadcast %cst_80 : f32 to vector<2x128xf32>
    %c0_81 = arith.constant 0 : index
    %c0_82 = arith.constant 0 : index
    %111 = vector.load %arg12[%c0_81, %c0_82] : memref<8x128xf32, #tpu.memory_space<vmem>>, vector<2x128xf32>
    %c0_83 = arith.constant 0 : index
    %c0_84 = arith.constant 0 : index
    %c0_85 = arith.constant 0 : index
    %112 = vector.load %arg4[%c0_83, %c0_84, %c0_85] : memref<4x128x128xf32, #tpu.memory_space<vmem>>, vector<1x128x128xf32>
    %113 = vector.shape_cast %112 : vector<1x128x128xf32> to vector<128x128xf32>
    %cst_86 = arith.constant dense<0.000000e+00> : vector<2x128xf32>
    %114 = tpu.matmul %111, %113, %cst_86 {dimension_numbers = #tpu.dot_dimension_numbers<[1], [0], [0], [1], [0, 0, 1, 1], [], []>} : vector<2x128xf32>, vector<128x128xf32>, vector<2x128xf32> -> vector<2x128xf32>
    %115 = arith.addf %110, %114 : vector<2x128xf32>
    %c2_87 = arith.constant 2 : index
    %c0_88 = arith.constant 0 : index
    %116 = vector.load %arg12[%c2_87, %c0_88] : memref<8x128xf32, #tpu.memory_space<vmem>>, vector<2x128xf32>
    %c1_89 = arith.constant 1 : index
    %c0_90 = arith.constant 0 : index
    %c0_91 = arith.constant 0 : index
    %117 = vector.load %arg4[%c1_89, %c0_90, %c0_91] : memref<4x128x128xf32, #tpu.memory_space<vmem>>, vector<1x128x128xf32>
    %118 = vector.shape_cast %117 : vector<1x128x128xf32> to vector<128x128xf32>
    %cst_92 = arith.constant dense<0.000000e+00> : vector<2x128xf32>
    %119 = tpu.matmul %116, %118, %cst_92 {dimension_numbers = #tpu.dot_dimension_numbers<[1], [0], [0], [1], [0, 0, 1, 1], [], []>} : vector<2x128xf32>, vector<128x128xf32>, vector<2x128xf32> -> vector<2x128xf32>
    %120 = arith.addf %115, %119 : vector<2x128xf32>
    %c4_93 = arith.constant 4 : index
    %c0_94 = arith.constant 0 : index
    %121 = vector.load %arg12[%c4_93, %c0_94] : memref<8x128xf32, #tpu.memory_space<vmem>>, vector<2x128xf32>
    %c2_95 = arith.constant 2 : index
    %c0_96 = arith.constant 0 : index
    %c0_97 = arith.constant 0 : index
    %122 = vector.load %arg4[%c2_95, %c0_96, %c0_97] : memref<4x128x128xf32, #tpu.memory_space<vmem>>, vector<1x128x128xf32>
    %123 = vector.shape_cast %122 : vector<1x128x128xf32> to vector<128x128xf32>
    %cst_98 = arith.constant dense<0.000000e+00> : vector<2x128xf32>
    %124 = tpu.matmul %121, %123, %cst_98 {dimension_numbers = #tpu.dot_dimension_numbers<[1], [0], [0], [1], [0, 0, 1, 1], [], []>} : vector<2x128xf32>, vector<128x128xf32>, vector<2x128xf32> -> vector<2x128xf32>
    %125 = arith.addf %120, %124 : vector<2x128xf32>
    %c6_99 = arith.constant 6 : index
    %c0_100 = arith.constant 0 : index
    %126 = vector.load %arg12[%c6_99, %c0_100] : memref<8x128xf32, #tpu.memory_space<vmem>>, vector<2x128xf32>
    %c3_101 = arith.constant 3 : index
    %c0_102 = arith.constant 0 : index
    %c0_103 = arith.constant 0 : index
    %127 = vector.load %arg4[%c3_101, %c0_102, %c0_103] : memref<4x128x128xf32, #tpu.memory_space<vmem>>, vector<1x128x128xf32>
    %128 = vector.shape_cast %127 : vector<1x128x128xf32> to vector<128x128xf32>
    %cst_104 = arith.constant dense<0.000000e+00> : vector<2x128xf32>
    %129 = tpu.matmul %126, %128, %cst_104 {dimension_numbers = #tpu.dot_dimension_numbers<[1], [0], [0], [1], [0, 0, 1, 1], [], []>} : vector<2x128xf32>, vector<128x128xf32>, vector<2x128xf32> -> vector<2x128xf32>
    %130 = arith.addf %125, %129 : vector<2x128xf32>
    %c0_105 = arith.constant 0 : index
    %c0_106 = arith.constant 0 : index
    %131 = vector.load %arg8[%c0_105, %c0_106] : memref<1x128xf32, #tpu.memory_space<vmem>>, vector<1x128xf32>
    %132 = vector.broadcast %131 : vector<1x128xf32> to vector<2x128xf32>
    %133 = arith.addf %130, %132 : vector<2x128xf32>
    %c0_107 = arith.constant 0 : index
    %c0_108 = arith.constant 0 : index
    %134 = vector.load %arg9[%c0_107, %c0_108] : memref<2x128xf32, #tpu.memory_space<vmem>>, vector<2x128xf32>
    tpu.vector_store %arg9[%c0_107, %c0_108], %133 {strides = array<i32>} : memref<2x128xf32, #tpu.memory_space<vmem>>, vector<2x128xf32>,
    return
  }
}

</mosaic_0001>

<llo_original>
// kernel: lenet_forward.1
$region0: #{lenet_forward.1}
  #allocation0 [shape = 'u32[]', space=smem, size = 0x4, offset = 0x4, fixed_abs, tag = 'smem constant byte address 0x4 - core index']
  #allocation1 [shape = 'u32[72,128]{1,0:T(1,128)}', space=vmem, size = 0x9000, scoped, tag = 'internal scratch']
  #allocation2 [shape = 'f32[40,256]{1,0:T(8,128)}', space=vmem, size = 0xa000, scoped, tag = 'scratch operand']
  #allocation3 [shape = 'f32[16,128]{1,0:T(8,128)}', space=vmem, size = 0x2000, scoped, tag = 'scratch operand']
  #allocation4 [shape = 'f32[8,128]{1,0:T(8,128)}', space=vmem, size = 0x1000, scoped, tag = 'scratch operand']
  %s0 = inlined_call_operand.vmem [shape: f32[40,256], index: 0, kind: input, shape index: {}]
  %s1 = inlined_call_operand.vmem [shape: f32[256,256], index: 1, kind: input, shape index: {}]
  %s2 = inlined_call_operand.vmem [shape: f32[5,256,128], index: 2, kind: input, shape index: {}]
  %s3 = inlined_call_operand.vmem [shape: f32[5,128,128], index: 3, kind: input, shape index: {}]
  %s4 = inlined_call_operand.vmem [shape: f32[4,128,128], index: 4, kind: input, shape index: {}]
  %s5 = inlined_call_operand.vmem [shape: f32[1,256], index: 5, kind: input, shape index: {}]
  %s6 = inlined_call_operand.vmem [shape: f32[1,128], index: 6, kind: input, shape index: {}]
  %s7 = inlined_call_operand.vmem [shape: f32[1,128], index: 7, kind: input, shape index: {}]
  %s8 = inlined_call_operand.vmem [shape: f32[1,128], index: 8, kind: input, shape index: {}]
  %s9 = inlined_call_operand.hbm [shape: f32[2,128], index: 9, kind: output, shape index: {}]
  %s10 = sld [smem:[#allocation0]]
  $region46: #{lenet_forward.1} parent=0
    _
  %s12 = ssub.s32 1, %s10
  %s13 = scalar_select 0, %s12, %s10
  $region1: #{lenet_forward.1} parent=0
    #allocation5 [shape = 'u8[1024]{0}', space=vmem, size = 0x400, scoped, tag = 'output window, operand 0, single buffered']
    #allocation6 [shape = 's32[1]{0}', space=sflag, size = 0x4, scoped, tag = 'scoped memory for lenet_forward.1']
    %14 = vsyncpa [#allocation6], 0
    // Predicated region
    $region2: #{lenet_forward.1} parent=1 // pred_check
      _
    $region3: #{lenet_forward.1} parent=1 // pred_check_branch
      %16 = sbr.rel (0) target = $region5
    $region4: #{lenet_forward.1} parent=1 // pred_region
      _
    $region5: #{lenet_forward.1} parent=1 // pred_fallthru
      _
    // Predicated region
    $region6: #{lenet_forward.1} parent=1 // pred_check
      _
    $region7: #{lenet_forward.1} parent=1 // pred_check_branch
      %18 = sbr.rel (0) target = $region9
    $region8: #{lenet_forward.1} parent=1 // pred_region
      _
    $region9: #{lenet_forward.1} parent=1 // pred_fallthru
      _
    // Predicated region
    $region10: #{lenet_forward.1} parent=1 // pred_check
      _
    $region11: #{lenet_forward.1} parent=1 // pred_check_branch
      %20 = sbr.rel (0) target = $region13
    $region12: #{lenet_forward.1} parent=1 // pred_region
      _
    $region13: #{lenet_forward.1} parent=1 // pred_fallthru
      _
    // Predicated region
    $region14: #{lenet_forward.1} parent=1 // pred_check
      _
    $region15: #{lenet_forward.1} parent=1 // pred_check_branch
      %22 = sbr.rel (0) target = $region17
    $region16: #{lenet_forward.1} parent=1 // pred_region
      _
    $region17: #{lenet_forward.1} parent=1 // pred_fallthru
      _
    // Predicated region
    $region18: #{lenet_forward.1} parent=1 // pred_check
      _
    $region19: #{lenet_forward.1} parent=1 // pred_check_branch
      %24 = sbr.rel (0) target = $region21
    $region20: #{lenet_forward.1} parent=1 // pred_region
      _
    $region21: #{lenet_forward.1} parent=1 // pred_fallthru
      _
    // Predicated region
    $region22: #{lenet_forward.1} parent=1 // pred_check
      _
    $region23: #{lenet_forward.1} parent=1 // pred_check_branch
      %26 = sbr.rel (0) target = $region25
    $region24: #{lenet_forward.1} parent=1 // pred_region
      _
    $region25: #{lenet_forward.1} parent=1 // pred_fallthru
      _
    // Predicated region
    $region26: #{lenet_forward.1} parent=1 // pred_check
      _
    $region27: #{lenet_forward.1} parent=1 // pred_check_branch
      %28 = sbr.rel (0) target = $region29
    $region28: #{lenet_forward.1} parent=1 // pred_region
      _
    $region29: #{lenet_forward.1} parent=1 // pred_fallthru
      _
    // Predicated region
    $region30: #{lenet_forward.1} parent=1 // pred_check
      _
    $region31: #{lenet_forward.1} parent=1 // pred_check_branch
      %30 = sbr.rel (0) target = $region33
    $region32: #{lenet_forward.1} parent=1 // pred_region
      _
    $region33: #{lenet_forward.1} parent=1 // pred_fallthru
      _
    // Predicated region
    $region34: #{lenet_forward.1} parent=1 // pred_check
      _
    $region35: #{lenet_forward.1} parent=1 // pred_check_branch
      %32 = sbr.rel (0) target = $region37
    $region36: #{lenet_forward.1} parent=1 // pred_region
      _
    $region37: #{lenet_forward.1} parent=1 // pred_fallthru
      _
    %v33 = vld [vmem:[%s0] sm:$0xff]
    %v34 = vld [vmem:[%s0 + $0x8] sm:$0xff]
    %v35 = vld [vmem:[%s0 + $0x10] sm:$0xff]
    %v36 = vld [vmem:[%s0 + $0x18] sm:$0xff]
    %v37 = vld [vmem:[%s0 + $0x20] sm:$0xff]
    %v38 = vld [vmem:[%s0 + $0x28] sm:$0xff]
    %v39 = vld [vmem:[%s0 + $0x30] sm:$0xff]
    %v40 = vld [vmem:[%s0 + $0x38] sm:$0xff]
    %v41 = vld [vmem:[%s0 + $0x40] sm:$0xff]
    %v42 = vld [vmem:[%s0 + $0x48] sm:$0xff]
    %v43 = vld [vmem:[%s1] sm:$0xff]
    %v44 = vld [vmem:[%s1 + $0x8] sm:$0xff]
    %v45 = vld [vmem:[%s1 + $0x10] sm:$0xff]
    %v46 = vld [vmem:[%s1 + $0x18] sm:$0xff]
    %v47 = vld [vmem:[%s1 + $0x20] sm:$0xff]
    %v48 = vld [vmem:[%s1 + $0x28] sm:$0xff]
    %v49 = vld [vmem:[%s1 + $0x30] sm:$0xff]
    %v50 = vld [vmem:[%s1 + $0x38] sm:$0xff]
    %v51 = vld [vmem:[%s1 + $0x40] sm:$0xff]
    %v52 = vld [vmem:[%s1 + $0x48] sm:$0xff]
    %v53 = vld [vmem:[%s1 + $0x50] sm:$0xff]
    %v54 = vld [vmem:[%s1 + $0x58] sm:$0xff]
    %v55 = vld [vmem:[%s1 + $0x60] sm:$0xff]
    %v56 = vld [vmem:[%s1 + $0x68] sm:$0xff]
    %v57 = vld [vmem:[%s1 + $0x70] sm:$0xff]
    %v58 = vld [vmem:[%s1 + $0x78] sm:$0xff]
    %v59 = vld [vmem:[%s1 + $0x80] sm:$0xff]
    %v60 = vld [vmem:[%s1 + $0x88] sm:$0xff]
    %v61 = vld [vmem:[%s1 + $0x90] sm:$0xff]
    %v62 = vld [vmem:[%s1 + $0x98] sm:$0xff]
    %v63 = vld [vmem:[%s1 + $0xa0] sm:$0xff]
    %v64 = vld [vmem:[%s1 + $0xa8] sm:$0xff]
    %v65 = vld [vmem:[%s1 + $0xb0] sm:$0xff]
    %v66 = vld [vmem:[%s1 + $0xb8] sm:$0xff]
    %v67 = vld [vmem:[%s1 + $0xc0] sm:$0xff]
    %v68 = vld [vmem:[%s1 + $0xc8] sm:$0xff]
    %v69 = vld [vmem:[%s1 + $0xd0] sm:$0xff]
    %v70 = vld [vmem:[%s1 + $0xd8] sm:$0xff]
    %v71 = vld [vmem:[%s1 + $0xe0] sm:$0xff]
    %v72 = vld [vmem:[%s1 + $0xe8] sm:$0xff]
    %v73 = vld [vmem:[%s1 + $0xf0] sm:$0xff]
    %v74 = vld [vmem:[%s1 + $0xf8] sm:$0xff]
    %v75 = vld [vmem:[%s1 + $0x100] sm:$0xff]
    %v76 = vld [vmem:[%s1 + $0x108] sm:$0xff]
    %v77 = vld [vmem:[%s1 + $0x110] sm:$0xff]
    %v78 = vld [vmem:[%s1 + $0x118] sm:$0xff]
    %v79 = vld [vmem:[%s1 + $0x120] sm:$0xff]
    %v80 = vld [vmem:[%s1 + $0x128] sm:$0xff]
    %v81 = vld [vmem:[%s1 + $0x130] sm:$0xff]
    %v82 = vld [vmem:[%s1 + $0x138] sm:$0xff]
    %v83 = vld [vmem:[%s1 + $0x140] sm:$0xff]
    %v84 = vld [vmem:[%s1 + $0x148] sm:$0xff]
    %v85 = vld [vmem:[%s1 + $0x150] sm:$0xff]
    %v86 = vld [vmem:[%s1 + $0x158] sm:$0xff]
    %v87 = vld [vmem:[%s1 + $0x160] sm:$0xff]
    %v88 = vld [vmem:[%s1 + $0x168] sm:$0xff]
    %v89 = vld [vmem:[%s1 + $0x170] sm:$0xff]
    %v90 = vld [vmem:[%s1 + $0x178] sm:$0xff]
    %v91 = vld [vmem:[%s1 + $0x180] sm:$0xff]
    %v92 = vld [vmem:[%s1 + $0x188] sm:$0xff]
    %v93 = vld [vmem:[%s1 + $0x190] sm:$0xff]
    %v94 = vld [vmem:[%s1 + $0x198] sm:$0xff]
    %v95 = vld [vmem:[%s1 + $0x1a0] sm:$0xff]
    %v96 = vld [vmem:[%s1 + $0x1a8] sm:$0xff]
    %v97 = vld [vmem:[%s1 + $0x1b0] sm:$0xff]
    %v98 = vld [vmem:[%s1 + $0x1b8] sm:$0xff]
    %v99 = vld [vmem:[%s1 + $0x1c0] sm:$0xff]
    %v100 = vld [vmem:[%s1 + $0x1c8] sm:$0xff]
    %v101 = vld [vmem:[%s1 + $0x1d0] sm:$0xff]
    %v102 = vld [vmem:[%s1 + $0x1d8] sm:$0xff]
    %v103 = vld [vmem:[%s1 + $0x1e0] sm:$0xff]
    %v104 = vld [vmem:[%s1 + $0x1e8] sm:$0xff]
    %v105 = vld [vmem:[%s1 + $0x1f0] sm:$0xff]
    %v106 = vld [vmem:[%s1 + $0x1f8] sm:$0xff]
    %v107 = vld [vmem:[%s5] sm:$0x3]
    %v109 = vperm.slane %v107, 0
    %v110 = vperm.slane %v107, 1
    %113 = vmatpush.msra.mxu0 %v73
    %114 = vmatpush.msra.mxu0 %v71
    %115 = vmatpush.msra.mxu0 %v69
    %116 = vmatpush.msra.mxu0 %v67
    %117 = vmatpush.msra.mxu0 %v65
    %118 = vmatpush.msra.mxu0 %v63
    %119 = vmatpush.msra.mxu0 %v61
    %120 = vmatpush.msra.mxu0 %v59
    %121 = vmatpush.msra.mxu0 %v57
    %122 = vmatpush.msra.mxu0 %v55
    %123 = vmatpush.msra.mxu0 %v53
    %124 = vmatpush.msra.mxu0 %v51
    %125 = vmatpush.msra.mxu0 %v49
    %126 = vmatpush.msra.mxu0 %v47
    %127 = vmatpush.msra.mxu0 %v45
    %128 = vmatpush.msra.mxu0 %v43
    %129 = vmatmul.f32.gmra.mxu0 %v33
    %v130 = vpop.f32.mrf.mxu0
    %v131 = vadd.f32 %v109, %v130
    %132 = vmatmul.f32.gmra.mxu0 %v35
    %v133 = vpop.f32.mrf.mxu0
    %v134 = vadd.f32 %v109, %v133
    %135 = vmatmul.f32.gmra.mxu0 %v37
    %v136 = vpop.f32.mrf.mxu0
    %v137 = vadd.f32 %v109, %v136
    %138 = vmatmul.f32.gmra.mxu0 %v39
    %v139 = vpop.f32.mrf.mxu0
    %v140 = vadd.f32 %v109, %v139
    %141 = vmatmul.f32.gmra.mxu0 %v41
    %v142 = vpop.f32.mrf.mxu0
    %v143 = vadd.f32 %v109, %v142
    %144 = vdwg.mxu0
    %145 = vmatpush.msra.mxu0 %v105
    %146 = vmatpush.msra.mxu0 %v103
    %147 = vmatpush.msra.mxu0 %v101
    %148 = vmatpush.msra.mxu0 %v99
    %149 = vmatpush.msra.mxu0 %v97
    %150 = vmatpush.msra.mxu0 %v95
    %151 = vmatpush.msra.mxu0 %v93
    %152 = vmatpush.msra.mxu0 %v91
    %153 = vmatpush.msra.mxu0 %v89
    %154 = vmatpush.msra.mxu0 %v87
    %155 = vmatpush.msra.mxu0 %v85
    %156 = vmatpush.msra.mxu0 %v83
    %157 = vmatpush.msra.mxu0 %v81
    %158 = vmatpush.msra.mxu0 %v79
    %159 = vmatpush.msra.mxu0 %v77
    %160 = vmatpush.msra.mxu0 %v75
    %161 = vmatmul.f32.gmra.mxu0 %v34
    %v162 = vpop.f32.mrf.mxu0
    %v163 = vadd.f32 %v131, %v162
    %164 = vmatmul.f32.gmra.mxu0 %v36
    %v165 = vpop.f32.mrf.mxu0
    %v166 = vadd.f32 %v134, %v165
    %167 = vmatmul.f32.gmra.mxu0 %v38
    %v168 = vpop.f32.mrf.mxu0
    %v169 = vadd.f32 %v137, %v168
    %170 = vmatmul.f32.gmra.mxu0 %v40
    %v171 = vpop.f32.mrf.mxu0
    %v172 = vadd.f32 %v140, %v171
    %173 = vmatmul.f32.gmra.mxu0 %v42
    %v174 = vpop.f32.mrf.mxu0
    %v175 = vadd.f32 %v143, %v174
    %176 = vdwg.mxu0
    %177 = vmatpush.msra.mxu0 %v74
    %178 = vmatpush.msra.mxu0 %v72
    %179 = vmatpush.msra.mxu0 %v70
    %180 = vmatpush.msra.mxu0 %v68
    %181 = vmatpush.msra.mxu0 %v66
    %182 = vmatpush.msra.mxu0 %v64
    %183 = vmatpush.msra.mxu0 %v62
    %184 = vmatpush.msra.mxu0 %v60
    %185 = vmatpush.msra.mxu0 %v58
    %186 = vmatpush.msra.mxu0 %v56
    %187 = vmatpush.msra.mxu0 %v54
    %188 = vmatpush.msra.mxu0 %v52
    %189 = vmatpush.msra.mxu0 %v50
    %190 = vmatpush.msra.mxu0 %v48
    %191 = vmatpush.msra.mxu0 %v46
    %192 = vmatpush.msra.mxu0 %v44
    %193 = vmatmul.f32.gmra.mxu0 %v33
    %v194 = vpop.f32.mrf.mxu0
    %v195 = vadd.f32 %v110, %v194
    %196 = vmatmul.f32.gmra.mxu0 %v35
    %v197 = vpop.f32.mrf.mxu0
    %v198 = vadd.f32 %v110, %v197
    %199 = vmatmul.f32.gmra.mxu0 %v37
    %v200 = vpop.f32.mrf.mxu0
    %v201 = vadd.f32 %v110, %v200
    %202 = vmatmul.f32.gmra.mxu0 %v39
    %v203 = vpop.f32.mrf.mxu0
    %v204 = vadd.f32 %v110, %v203
    %205 = vmatmul.f32.gmra.mxu0 %v41
    %v206 = vpop.f32.mrf.mxu0
    %v207 = vadd.f32 %v110, %v206
    %208 = vdwg.mxu0
    %209 = vmatpush.msra.mxu0 %v106
    %210 = vmatpush.msra.mxu0 %v104
    %211 = vmatpush.msra.mxu0 %v102
    %212 = vmatpush.msra.mxu0 %v100
    %213 = vmatpush.msra.mxu0 %v98
    %214 = vmatpush.msra.mxu0 %v96
    %215 = vmatpush.msra.mxu0 %v94
    %216 = vmatpush.msra.mxu0 %v92
    %217 = vmatpush.msra.mxu0 %v90
    %218 = vmatpush.msra.mxu0 %v88
    %219 = vmatpush.msra.mxu0 %v86
    %220 = vmatpush.msra.mxu0 %v84
    %221 = vmatpush.msra.mxu0 %v82
    %222 = vmatpush.msra.mxu0 %v80
    %223 = vmatpush.msra.mxu0 %v78
    %224 = vmatpush.msra.mxu0 %v76
    %225 = vmatmul.f32.gmra.mxu0 %v34
    %v226 = vpop.f32.mrf.mxu0
    %v227 = vadd.f32 %v195, %v226
    %228 = vmatmul.f32.gmra.mxu0 %v36
    %v229 = vpop.f32.mrf.mxu0
    %v230 = vadd.f32 %v198, %v229
    %231 = vmatmul.f32.gmra.mxu0 %v38
    %v232 = vpop.f32.mrf.mxu0
    %v233 = vadd.f32 %v201, %v232
    %234 = vmatmul.f32.gmra.mxu0 %v40
    %v235 = vpop.f32.mrf.mxu0
    %v236 = vadd.f32 %v204, %v235
    %237 = vmatmul.f32.gmra.mxu0 %v42
    %v238 = vpop.f32.mrf.mxu0
    %v239 = vadd.f32 %v207, %v238
    %240 = vdwg.mxu0
    %v241 = vsub.f32 0.0, %v163
    %v242 = vsub.f32 0.0, %v227
    %v243 = vsub.f32 0.0, %v166
    %v244 = vsub.f32 0.0, %v230
    %v245 = vsub.f32 0.0, %v169
    %v246 = vsub.f32 0.0, %v233
    %v247 = vsub.f32 0.0, %v172
    %v248 = vsub.f32 0.0, %v236
    %v249 = vsub.f32 0.0, %v175
    %v250 = vsub.f32 0.0, %v239
    %v251 = vmul.f32 %v241, 1.442695
    %v252 = vpow.pop %v251
    %v253 = vmul.f32 %v242, 1.442695
    %v254 = vpow.pop %v253
    %v255 = vmul.f32 %v243, 1.442695
    %v256 = vpow.pop %v255
    %v257 = vmul.f32 %v244, 1.442695
    %v258 = vpow.pop %v257
    %v259 = vmul.f32 %v245, 1.442695
    %v260 = vpow.pop %v259
    %v261 = vmul.f32 %v246, 1.442695
    %v262 = vpow.pop %v261
    %v263 = vmul.f32 %v247, 1.442695
    %v264 = vpow.pop %v263
    %v265 = vmul.f32 %v248, 1.442695
    %v266 = vpow.pop %v265
    %v267 = vmul.f32 %v249, 1.442695
    %v268 = vpow.pop %v267
    %v269 = vmul.f32 %v250, 1.442695
    %v270 = vpow.pop %v269
    %v271 = vadd.f32 %v252, 1.0
    %v272 = vadd.f32 %v254, 1.0
    %v273 = vadd.f32 %v256, 1.0
    %v274 = vadd.f32 %v258, 1.0
    %v275 = vadd.f32 %v260, 1.0
    %v276 = vadd.f32 %v262, 1.0
    %v277 = vadd.f32 %v264, 1.0
    %v278 = vadd.f32 %v266, 1.0
    %v279 = vadd.f32 %v268, 1.0
    %v280 = vadd.f32 %v270, 1.0
    %v281 = vrcp.pop %v271
    %v282 = vmul.f32 %v271, %v281
    %v283 = vsub.f32 1.0, %v282
    %v284 = vmul.f32 %v281, %v283
    %v285 = vadd.f32 %v281, %v284
    %vm286 = vweird.f32 %v271
    %vm287 = vweird.f32 %v281
    %vm288 = vmor %vm286, %vm287
    %v289 = vsel %vm288, %v281, %v285
    %v290 = vand.u32 2147483647, %v271
    %vm291 = vcmp.eq.f32.partialorder %v290, 8.507059e+37
    %v292 = vand.u32 %v271, 2147483648
    %v293 = vor.u32 1.1754944e-38, %v292
    %v294 = vsel %vm291, %v293, %v289
    %v295 = vmul.f32 1.0, %v294
    %v296 = vrcp.pop %v272
    %v297 = vmul.f32 %v272, %v296
    %v298 = vsub.f32 1.0, %v297
    %v299 = vmul.f32 %v296, %v298
    %v300 = vadd.f32 %v296, %v299
    %vm301 = vweird.f32 %v272
    %vm302 = vweird.f32 %v296
    %vm303 = vmor %vm301, %vm302
    %v304 = vsel %vm303, %v296, %v300
    %v305 = vand.u32 2147483647, %v272
    %vm306 = vcmp.eq.f32.partialorder %v305, 8.507059e+37
    %v307 = vand.u32 %v272, 2147483648
    %v308 = vor.u32 1.1754944e-38, %v307
    %v309 = vsel %vm306, %v308, %v304
    %v310 = vmul.f32 1.0, %v309
    %v311 = vrcp.pop %v273
    %v312 = vmul.f32 %v273, %v311
    %v313 = vsub.f32 1.0, %v312
    %v314 = vmul.f32 %v311, %v313
    %v315 = vadd.f32 %v311, %v314
    %vm316 = vweird.f32 %v273
    %vm317 = vweird.f32 %v311
    %vm318 = vmor %vm316, %vm317
    %v319 = vsel %vm318, %v311, %v315
    %v320 = vand.u32 2147483647, %v273
    %vm321 = vcmp.eq.f32.partialorder %v320, 8.507059e+37
    %v322 = vand.u32 %v273, 2147483648
    %v323 = vor.u32 1.1754944e-38, %v322
    %v324 = vsel %vm321, %v323, %v319
    %v325 = vmul.f32 1.0, %v324
    %v326 = vrcp.pop %v274
    %v327 = vmul.f32 %v274, %v326
    %v328 = vsub.f32 1.0, %v327
    %v329 = vmul.f32 %v326, %v328
    %v330 = vadd.f32 %v326, %v329
    %vm331 = vweird.f32 %v274
    %vm332 = vweird.f32 %v326
    %vm333 = vmor %vm331, %vm332
    %v334 = vsel %vm333, %v326, %v330
    %v335 = vand.u32 2147483647, %v274
    %vm336 = vcmp.eq.f32.partialorder %v335, 8.507059e+37
    %v337 = vand.u32 %v274, 2147483648
    %v338 = vor.u32 1.1754944e-38, %v337
    %v339 = vsel %vm336, %v338, %v334
    %v340 = vmul.f32 1.0, %v339
    %v341 = vrcp.pop %v275
    %v342 = vmul.f32 %v275, %v341
    %v343 = vsub.f32 1.0, %v342
    %v344 = vmul.f32 %v341, %v343
    %v345 = vadd.f32 %v341, %v344
    %vm346 = vweird.f32 %v275
    %vm347 = vweird.f32 %v341
    %vm348 = vmor %vm346, %vm347
    %v349 = vsel %vm348, %v341, %v345
    %v350 = vand.u32 2147483647, %v275
    %vm351 = vcmp.eq.f32.partialorder %v350, 8.507059e+37
    %v352 = vand.u32 %v275, 2147483648
    %v353 = vor.u32 1.1754944e-38, %v352
    %v354 = vsel %vm351, %v353, %v349
    %v355 = vmul.f32 1.0, %v354
    %v356 = vrcp.pop %v276
    %v357 = vmul.f32 %v276, %v356
    %v358 = vsub.f32 1.0, %v357
    %v359 = vmul.f32 %v356, %v358
    %v360 = vadd.f32 %v356, %v359
    %vm361 = vweird.f32 %v276
    %vm362 = vweird.f32 %v356
    %vm363 = vmor %vm361, %vm362
    %v364 = vsel %vm363, %v356, %v360
    %v365 = vand.u32 2147483647, %v276
    %vm366 = vcmp.eq.f32.partialorder %v365, 8.507059e+37
    %v367 = vand.u32 %v276, 2147483648
    %v368 = vor.u32 1.1754944e-38, %v367
    %v369 = vsel %vm366, %v368, %v364
    %v370 = vmul.f32 1.0, %v369
    %v371 = vrcp.pop %v277
    %v372 = vmul.f32 %v277, %v371
    %v373 = vsub.f32 1.0, %v372
    %v374 = vmul.f32 %v371, %v373
    %v375 = vadd.f32 %v371, %v374
    %vm376 = vweird.f32 %v277
    %vm377 = vweird.f32 %v371
    %vm378 = vmor %vm376, %vm377
    %v379 = vsel %vm378, %v371, %v375
    %v380 = vand.u32 2147483647, %v277
    %vm381 = vcmp.eq.f32.partialorder %v380, 8.507059e+37
    %v382 = vand.u32 %v277, 2147483648
    %v383 = vor.u32 1.1754944e-38, %v382
    %v384 = vsel %vm381, %v383, %v379
    %v385 = vmul.f32 1.0, %v384
    %v386 = vrcp.pop %v278
    %v387 = vmul.f32 %v278, %v386
    %v388 = vsub.f32 1.0, %v387
    %v389 = vmul.f32 %v386, %v388
    %v390 = vadd.f32 %v386, %v389
    %vm391 = vweird.f32 %v278
    %vm392 = vweird.f32 %v386
    %vm393 = vmor %vm391, %vm392
    %v394 = vsel %vm393, %v386, %v390
    %v395 = vand.u32 2147483647, %v278
    %vm396 = vcmp.eq.f32.partialorder %v395, 8.507059e+37
    %v397 = vand.u32 %v278, 2147483648
    %v398 = vor.u32 1.1754944e-38, %v397
    %v399 = vsel %vm396, %v398, %v394
    %v400 = vmul.f32 1.0, %v399
    %v401 = vrcp.pop %v279
    %v402 = vmul.f32 %v279, %v401
    %v403 = vsub.f32 1.0, %v402
    %v404 = vmul.f32 %v401, %v403
    %v405 = vadd.f32 %v401, %v404
    %vm406 = vweird.f32 %v279
    %vm407 = vweird.f32 %v401
    %vm408 = vmor %vm406, %vm407
    %v409 = vsel %vm408, %v401, %v405
    %v410 = vand.u32 2147483647, %v279
    %vm411 = vcmp.eq.f32.partialorder %v410, 8.507059e+37
    %v412 = vand.u32 %v279, 2147483648
    %v413 = vor.u32 1.1754944e-38, %v412
    %v414 = vsel %vm411, %v413, %v409
    %v415 = vmul.f32 1.0, %v414
    %v416 = vrcp.pop %v280
    %v417 = vmul.f32 %v280, %v416
    %v418 = vsub.f32 1.0, %v417
    %v419 = vmul.f32 %v416, %v418
    %v420 = vadd.f32 %v416, %v419
    %vm421 = vweird.f32 %v280
    %vm422 = vweird.f32 %v416
    %vm423 = vmor %vm421, %vm422
    %v424 = vsel %vm423, %v416, %v420
    %v425 = vand.u32 2147483647, %v280
    %vm426 = vcmp.eq.f32.partialorder %v425, 8.507059e+37
    %v427 = vand.u32 %v280, 2147483648
    %v428 = vor.u32 1.1754944e-38, %v427
    %v429 = vsel %vm426, %v428, %v424
    %v430 = vmul.f32 1.0, %v429
    %v431 = vlaneseq
    %v432 = vshrl.u32 %v431, 7
    %v433 = vadd.s32 %v432, 8
    %v434 = vadd.s32 %v432, 16
    %v435 = vadd.s32 %v432, 24
    %v436 = vadd.s32 %v432, 32
    %vm437 = vcmp.ge.s32.totalorder %v432, 6
    %vm438 = vcmp.ge.s32.totalorder %v433, 6
    %vm439 = vcmp.ge.s32.totalorder %v434, 6
    %vm440 = vcmp.ge.s32.totalorder %v435, 6
    %vm441 = vcmp.ge.s32.totalorder %v436, 6
    %vm442 = vcmp.lt.s32.totalorder %v432, 14
    %vm443 = vcmp.lt.s32.totalorder %v433, 14
    %vm444 = vcmp.lt.s32.totalorder %v434, 14
    %vm445 = vcmp.lt.s32.totalorder %v435, 14
    %vm446 = vcmp.lt.s32.totalorder %v436, 14
    %vm447 = vmand %vm437, %vm442
    %vm448 = vmand %vm438, %vm443
    %vm449 = vmand %vm439, %vm444
    %vm450 = vmand %vm440, %vm445
    %vm451 = vmand %vm441, %vm446
    %vm452 = vcmp.ge.s32.totalorder %v432, 26
    %vm453 = vcmp.ge.s32.totalorder %v433, 26
    %vm454 = vcmp.ge.s32.totalorder %v434, 26
    %vm455 = vcmp.ge.s32.totalorder %v435, 26
    %vm456 = vcmp.ge.s32.totalorder %v436, 26
    %vm457 = vcmp.lt.s32.totalorder %v432, 34
    %vm458 = vcmp.lt.s32.totalorder %v433, 34
    %vm459 = vcmp.lt.s32.totalorder %v434, 34
    %vm460 = vcmp.lt.s32.totalorder %v435, 34
    %vm461 = vcmp.lt.s32.totalorder %v436, 34
    %vm462 = vmand %vm452, %vm457
    %vm463 = vmand %vm453, %vm458
    %vm464 = vmand %vm454, %vm459
    %vm465 = vmand %vm455, %vm460
    %vm466 = vmand %vm456, %vm461
    %vm467 = vmor %vm447, %vm462
    %vm468 = vmor %vm448, %vm463
    %vm469 = vmor %vm449, %vm464
    %vm470 = vmor %vm450, %vm465
    %vm471 = vmor %vm451, %vm466
    %v472 = vsel %vm467, %v295, 0.0
    %v473 = vsel %vm467, %v310, 0.0
    %v474 = vsel %vm468, %v325, 0.0
    %v475 = vsel %vm468, %v340, 0.0
    %v476 = vsel %vm469, %v355, 0.0
    %v477 = vsel %vm469, %v370, 0.0
    %v478 = vsel %vm470, %v385, 0.0
    %v479 = vsel %vm470, %v400, 0.0
    %v480 = vsel %vm471, %v415, 0.0
    %v481 = vsel %vm471, %v430, 0.0
    %482 = vst [vmem:[#allocation2] sm:$0xff] %v472
    %483 = vst [vmem:[#allocation2 + $0x8] sm:$0xff] %v473
    %484 = vst [vmem:[#allocation2 + $0x10] sm:$0xff] %v474
    %485 = vst [vmem:[#allocation2 + $0x18] sm:$0xff] %v475
    %486 = vst [vmem:[#allocation2 + $0x20] sm:$0xff] %v476
    %487 = vst [vmem:[#allocation2 + $0x28] sm:$0xff] %v477
    %488 = vst [vmem:[#allocation2 + $0x30] sm:$0xff] %v478
    %489 = vst [vmem:[#allocation2 + $0x38] sm:$0xff] %v479
    %490 = vst [vmem:[#allocation2 + $0x40] sm:$0xff] %v480
    %491 = vst [vmem:[#allocation2 + $0x48] sm:$0xff] %v481
    %v492 = vld [vmem:[#allocation2] sm:$0xff]
    %v493 = vld [vmem:[#allocation2 + $0x8] sm:$0xff]
    %v494 = vld [vmem:[#allocation2 + $0x10] sm:$0xff]
    %v495 = vld [vmem:[#allocation2 + $0x18] sm:$0xff]
    %v496 = vld [vmem:[%s2] sm:$0xff]
    %v497 = vld [vmem:[%s2 + $0x8] sm:$0xff]
    %v498 = vld [vmem:[%s2 + $0x10] sm:$0xff]
    %v499 = vld [vmem:[%s2 + $0x18] sm:$0xff]
    %v500 = vld [vmem:[%s2 + $0x20] sm:$0xff]
    %v501 = vld [vmem:[%s2 + $0x28] sm:$0xff]
    %v502 = vld [vmem:[%s2 + $0x30] sm:$0xff]
    %v503 = vld [vmem:[%s2 + $0x38] sm:$0xff]
    %v504 = vld [vmem:[%s2 + $0x40] sm:$0xff]
    %v505 = vld [vmem:[%s2 + $0x48] sm:$0xff]
    %v506 = vld [vmem:[%s2 + $0x50] sm:$0xff]
    %v507 = vld [vmem:[%s2 + $0x58] sm:$0xff]
    %v508 = vld [vmem:[%s2 + $0x60] sm:$0xff]
    %v509 = vld [vmem:[%s2 + $0x68] sm:$0xff]
    %v510 = vld [vmem:[%s2 + $0x70] sm:$0xff]
    %v511 = vld [vmem:[%s2 + $0x78] sm:$0xff]
    %v512 = vld [vmem:[%s2 + $0x80] sm:$0xff]
    %v513 = vld [vmem:[%s2 + $0x88] sm:$0xff]
    %v514 = vld [vmem:[%s2 + $0x90] sm:$0xff]
    %v515 = vld [vmem:[%s2 + $0x98] sm:$0xff]
    %v516 = vld [vmem:[%s2 + $0xa0] sm:$0xff]
    %v517 = vld [vmem:[%s2 + $0xa8] sm:$0xff]
    %v518 = vld [vmem:[%s2 + $0xb0] sm:$0xff]
    %v519 = vld [vmem:[%s2 + $0xb8] sm:$0xff]
    %v520 = vld [vmem:[%s2 + $0xc0] sm:$0xff]
    %v521 = vld [vmem:[%s2 + $0xc8] sm:$0xff]
    %v522 = vld [vmem:[%s2 + $0xd0] sm:$0xff]
    %v523 = vld [vmem:[%s2 + $0xd8] sm:$0xff]
    %v524 = vld [vmem:[%s2 + $0xe0] sm:$0xff]
    %v525 = vld [vmem:[%s2 + $0xe8] sm:$0xff]
    %v526 = vld [vmem:[%s2 + $0xf0] sm:$0xff]
    %v527 = vld [vmem:[%s2 + $0xf8] sm:$0xff]
    %v528 = vld [vmem:[#allocation2 + $0x20] sm:$0xf0]
    %v529 = vld [vmem:[#allocation2 + $0x28] sm:$0xf0]
    %v530 = vld [vmem:[#allocation2 + $0x30] sm:$0xff]
    %v531 = vld [vmem:[#allocation2 + $0x38] sm:$0xff]
    %v532 = vld [vmem:[#allocation2 + $0x40] sm:$0xf]
    %v533 = vld [vmem:[#allocation2 + $0x48] sm:$0xf]
    %s534 = scalar_lea.vmem %s2, 256
    %v535 = vld [vmem:[%s534] sm:$0xff]
    %v536 = vld [vmem:[%s534 + $0x8] sm:$0xff]
    %v537 = vld [vmem:[%s534 + $0x10] sm:$0xff]
    %v538 = vld [vmem:[%s534 + $0x18] sm:$0xff]
    %v539 = vld [vmem:[%s534 + $0x20] sm:$0xff]
    %v540 = vld [vmem:[%s534 + $0x28] sm:$0xff]
    %v541 = vld [vmem:[%s534 + $0x30] sm:$0xff]
    %v542 = vld [vmem:[%s534 + $0x38] sm:$0xff]
    %v543 = vld [vmem:[%s534 + $0x40] sm:$0xff]
    %v544 = vld [vmem:[%s534 + $0x48] sm:$0xff]
    %v545 = vld [vmem:[%s534 + $0x50] sm:$0xff]
    %v546 = vld [vmem:[%s534 + $0x58] sm:$0xff]
    %v547 = vld [vmem:[%s534 + $0x60] sm:$0xff]
    %v548 = vld [vmem:[%s534 + $0x68] sm:$0xff]
    %v549 = vld [vmem:[%s534 + $0x70] sm:$0xff]
    %v550 = vld [vmem:[%s534 + $0x78] sm:$0xff]
    %v551 = vld [vmem:[%s534 + $0x80] sm:$0xff]
    %v552 = vld [vmem:[%s534 + $0x88] sm:$0xff]
    %v553 = vld [vmem:[%s534 + $0x90] sm:$0xff]
    %v554 = vld [vmem:[%s534 + $0x98] sm:$0xff]
    %v555 = vld [vmem:[%s534 + $0xa0] sm:$0xff]
    %v556 = vld [vmem:[%s534 + $0xa8] sm:$0xff]
    %v557 = vld [vmem:[%s534 + $0xb0] sm:$0xff]
    %v558 = vld [vmem:[%s534 + $0xb8] sm:$0xff]
    %v559 = vld [vmem:[%s534 + $0xc0] sm:$0xff]
    %v560 = vld [vmem:[%s534 + $0xc8] sm:$0xff]
    %v561 = vld [vmem:[%s534 + $0xd0] sm:$0xff]
    %v562 = vld [vmem:[%s534 + $0xd8] sm:$0xff]
    %v563 = vld [vmem:[%s534 + $0xe0] sm:$0xff]
    %v564 = vld [vmem:[%s534 + $0xe8] sm:$0xff]
    %v565 = vld [vmem:[%s534 + $0xf0] sm:$0xff]
    %v566 = vld [vmem:[%s534 + $0xf8] sm:$0xff]
    %vm573 = vcmask 1043456
    %v574 = vrot.slane %v528, 4
    %v575 = vrot.slane %v530, 4
    %v576 = vsel %vm573, %v574, %v575
    %v577 = vrot.slane %v529, 4
    %v578 = vrot.slane %v531, 4
    %v579 = vsel %vm573, %v577, %v578
    %v580 = vrot.slane %v532, 4
    %v581 = vsel %vm573, %v575, %v580
    %v582 = vrot.slane %v533, 4
    %v583 = vsel %vm573, %v578, %v582
    %588 = vmatpush.msra.mxu0 %v550
    %589 = vmatpush.msra.mxu0 %v549
    %590 = vmatpush.msra.mxu0 %v548
    %591 = vmatpush.msra.mxu0 %v547
    %592 = vmatpush.msra.mxu0 %v546
    %593 = vmatpush.msra.mxu0 %v545
    %594 = vmatpush.msra.mxu0 %v544
    %595 = vmatpush.msra.mxu0 %v543
    %596 = vmatpush.msra.mxu0 %v542
    %597 = vmatpush.msra.mxu0 %v541
    %598 = vmatpush.msra.mxu0 %v540
    %599 = vmatpush.msra.mxu0 %v539
    %600 = vmatpush.msra.mxu0 %v538
    %601 = vmatpush.msra.mxu0 %v537
    %602 = vmatpush.msra.mxu0 %v536
    %603 = vmatpush.msra.mxu0 %v535
    %604 = vmatmul.f32.gmra.mxu0 %v576
    %v605 = vpop.f32.mrf.mxu0
    %v606 = vadd.f32 0.0, %v605
    %607 = vmatmul.f32.gmra.mxu0 %v581
    %v608 = vpop.f32.mrf.mxu0
    %v609 = vadd.f32 0.0, %v608
    %610 = vdwg.mxu0
    %611 = vmatpush.msra.mxu0 %v566
    %612 = vmatpush.msra.mxu0 %v565
    %613 = vmatpush.msra.mxu0 %v564
    %614 = vmatpush.msra.mxu0 %v563
    %615 = vmatpush.msra.mxu0 %v562
    %616 = vmatpush.msra.mxu0 %v561
    %617 = vmatpush.msra.mxu0 %v560
    %618 = vmatpush.msra.mxu0 %v559
    %619 = vmatpush.msra.mxu0 %v558
    %620 = vmatpush.msra.mxu0 %v557
    %621 = vmatpush.msra.mxu0 %v556
    %622 = vmatpush.msra.mxu0 %v555
    %623 = vmatpush.msra.mxu0 %v554
    %624 = vmatpush.msra.mxu0 %v553
    %625 = vmatpush.msra.mxu0 %v552
    %626 = vmatpush.msra.mxu0 %v551
    %627 = vmatmul.f32.gmra.mxu0 %v579
    %v628 = vpop.f32.mrf.mxu0
    %v629 = vadd.f32 %v606, %v628
    %630 = vmatmul.f32.gmra.mxu0 %v583
    %v631 = vpop.f32.mrf.mxu0
    %v632 = vadd.f32 %v609, %v631
    %633 = vdwg.mxu0
    %634 = vmatpush.msra.mxu0 %v511
    %635 = vmatpush.msra.mxu0 %v510
    %636 = vmatpush.msra.mxu0 %v509
    %637 = vmatpush.msra.mxu0 %v508
    %638 = vmatpush.msra.mxu0 %v507
    %639 = vmatpush.msra.mxu0 %v506
    %640 = vmatpush.msra.mxu0 %v505
    %641 = vmatpush.msra.mxu0 %v504
    %642 = vmatpush.msra.mxu0 %v503
    %643 = vmatpush.msra.mxu0 %v502
    %644 = vmatpush.msra.mxu0 %v501
    %645 = vmatpush.msra.mxu0 %v500
    %646 = vmatpush.msra.mxu0 %v499
    %647 = vmatpush.msra.mxu0 %v498
    %648 = vmatpush.msra.mxu0 %v497
    %649 = vmatpush.msra.mxu0 %v496
    %650 = vmatmul.f32.gmra.mxu0 %v492
    %v651 = vpop.f32.mrf.mxu0
    %v652 = vadd.f32 %v629, %v651
    %653 = vmatmul.f32.gmra.mxu0 %v494
    %v654 = vpop.f32.mrf.mxu0
    %v655 = vadd.f32 %v632, %v654
    %656 = vdwg.mxu0
    %657 = vmatpush.msra.mxu0 %v527
    %658 = vmatpush.msra.mxu0 %v526
    %659 = vmatpush.msra.mxu0 %v525
    %660 = vmatpush.msra.mxu0 %v524
    %661 = vmatpush.msra.mxu0 %v523
    %662 = vmatpush.msra.mxu0 %v522
    %663 = vmatpush.msra.mxu0 %v521
    %664 = vmatpush.msra.mxu0 %v520
    %665 = vmatpush.msra.mxu0 %v519
    %666 = vmatpush.msra.mxu0 %v518
    %667 = vmatpush.msra.mxu0 %v517
    %668 = vmatpush.msra.mxu0 %v516
    %669 = vmatpush.msra.mxu0 %v515
    %670 = vmatpush.msra.mxu0 %v514
    %671 = vmatpush.msra.mxu0 %v513
    %672 = vmatpush.msra.mxu0 %v512
    %673 = vmatmul.f32.gmra.mxu0 %v493
    %v674 = vpop.f32.mrf.mxu0
    %v675 = vadd.f32 %v652, %v674
    %676 = vmatmul.f32.gmra.mxu0 %v495
    %v677 = vpop.f32.mrf.mxu0
    %v678 = vadd.f32 %v655, %v677
    %679 = vdwg.mxu0
    %v680 = vld [vmem:[#allocation2] sm:$0xfc]
    %v681 = vld [vmem:[#allocation2 + $0x8] sm:$0xfc]
    %v682 = vld [vmem:[#allocation2 + $0x10] sm:$0xff]
    %v683 = vld [vmem:[#allocation2 + $0x18] sm:$0xff]
    %v684 = vld [vmem:[#allocation2 + $0x20] sm:$0x3]
    %v685 = vld [vmem:[#allocation2 + $0x28] sm:$0x3]
    %s686 = scalar_lea.vmem %s2, 512
    %v687 = vld [vmem:[%s686] sm:$0xff]
    %v688 = vld [vmem:[%s686 + $0x8] sm:$0xff]
    %v689 = vld [vmem:[%s686 + $0x10] sm:$0xff]
    %v690 = vld [vmem:[%s686 + $0x18] sm:$0xff]
    %v691 = vld [vmem:[%s686 + $0x20] sm:$0xff]
    %v692 = vld [vmem:[%s686 + $0x28] sm:$0xff]
    %v693 = vld [vmem:[%s686 + $0x30] sm:$0xff]
    %v694 = vld [vmem:[%s686 + $0x38] sm:$0xff]
    %v695 = vld [vmem:[%s686 + $0x40] sm:$0xff]
    %v696 = vld [vmem:[%s686 + $0x48] sm:$0xff]
    %v697 = vld [vmem:[%s686 + $0x50] sm:$0xff]
    %v698 = vld [vmem:[%s686 + $0x58] sm:$0xff]
    %v699 = vld [vmem:[%s686 + $0x60] sm:$0xff]
    %v700 = vld [vmem:[%s686 + $0x68] sm:$0xff]
    %v701 = vld [vmem:[%s686 + $0x70] sm:$0xff]
    %v702 = vld [vmem:[%s686 + $0x78] sm:$0xff]
    %v703 = vld [vmem:[%s686 + $0x80] sm:$0xff]
    %v704 = vld [vmem:[%s686 + $0x88] sm:$0xff]
    %v705 = vld [vmem:[%s686 + $0x90] sm:$0xff]
    %v706 = vld [vmem:[%s686 + $0x98] sm:$0xff]
    %v707 = vld [vmem:[%s686 + $0xa0] sm:$0xff]
    %v708 = vld [vmem:[%s686 + $0xa8] sm:$0xff]
    %v709 = vld [vmem:[%s686 + $0xb0] sm:$0xff]
    %v710 = vld [vmem:[%s686 + $0xb8] sm:$0xff]
    %v711 = vld [vmem:[%s686 + $0xc0] sm:$0xff]
    %v712 = vld [vmem:[%s686 + $0xc8] sm:$0xff]
    %v713 = vld [vmem:[%s686 + $0xd0] sm:$0xff]
    %v714 = vld [vmem:[%s686 + $0xd8] sm:$0xff]
    %v715 = vld [vmem:[%s686 + $0xe0] sm:$0xff]
    %v716 = vld [vmem:[%s686 + $0xe8] sm:$0xff]
    %v717 = vld [vmem:[%s686 + $0xf0] sm:$0xff]
    %v718 = vld [vmem:[%s686 + $0xf8] sm:$0xff]
    %vm725 = vcmask 1045504
    %v726 = vrot.slane %v680, 2
    %v727 = vrot.slane %v682, 2
    %v728 = vsel %vm725, %v726, %v727
    %v729 = vrot.slane %v681, 2
    %v730 = vrot.slane %v683, 2
    %v731 = vsel %vm725, %v729, %v730
    %v732 = vrot.slane %v684, 2
    %v733 = vsel %vm725, %v727, %v732
    %v734 = vrot.slane %v685, 2
    %v735 = vsel %vm725, %v730, %v734
    %740 = vmatpush.msra.mxu0 %v702
    %741 = vmatpush.msra.mxu0 %v701
    %742 = vmatpush.msra.mxu0 %v700
    %743 = vmatpush.msra.mxu0 %v699
    %744 = vmatpush.msra.mxu0 %v698
    %745 = vmatpush.msra.mxu0 %v697
    %746 = vmatpush.msra.mxu0 %v696
    %747 = vmatpush.msra.mxu0 %v695
    %748 = vmatpush.msra.mxu0 %v694
    %749 = vmatpush.msra.mxu0 %v693
    %750 = vmatpush.msra.mxu0 %v692
    %751 = vmatpush.msra.mxu0 %v691
    %752 = vmatpush.msra.mxu0 %v690
    %753 = vmatpush.msra.mxu0 %v689
    %754 = vmatpush.msra.mxu0 %v688
    %755 = vmatpush.msra.mxu0 %v687
    %756 = vmatmul.f32.gmra.mxu0 %v728
    %v757 = vpop.f32.mrf.mxu0
    %v758 = vadd.f32 0.0, %v757
    %759 = vmatmul.f32.gmra.mxu0 %v733
    %v760 = vpop.f32.mrf.mxu0
    %v761 = vadd.f32 0.0, %v760
    %762 = vdwg.mxu0
    %763 = vmatpush.msra.mxu0 %v718
    %764 = vmatpush.msra.mxu0 %v717
    %765 = vmatpush.msra.mxu0 %v716
    %766 = vmatpush.msra.mxu0 %v715
    %767 = vmatpush.msra.mxu0 %v714
    %768 = vmatpush.msra.mxu0 %v713
    %769 = vmatpush.msra.mxu0 %v712
    %770 = vmatpush.msra.mxu0 %v711
    %771 = vmatpush.msra.mxu0 %v710
    %772 = vmatpush.msra.mxu0 %v709
    %773 = vmatpush.msra.mxu0 %v708
    %774 = vmatpush.msra.mxu0 %v707
    %775 = vmatpush.msra.mxu0 %v706
    %776 = vmatpush.msra.mxu0 %v705
    %777 = vmatpush.msra.mxu0 %v704
    %778 = vmatpush.msra.mxu0 %v703
    %779 = vmatmul.f32.gmra.mxu0 %v731
    %v780 = vpop.f32.mrf.mxu0
    %v781 = vadd.f32 %v758, %v780
    %782 = vmatmul.f32.gmra.mxu0 %v735
    %v783 = vpop.f32.mrf.mxu0
    %v784 = vadd.f32 %v761, %v783
    %785 = vdwg.mxu0
    %v786 = vadd.f32 %v675, %v781
    %v787 = vadd.f32 %v678, %v784
    %v788 = vld [vmem:[#allocation2 + $0x20] sm:$0xc0]
    %v789 = vld [vmem:[#allocation2 + $0x28] sm:$0xc0]
    %v790 = vld [vmem:[#allocation2 + $0x40] sm:$0x3f]
    %v791 = vld [vmem:[#allocation2 + $0x48] sm:$0x3f]
    %s792 = scalar_lea.vmem %s2, 768
    %v793 = vld [vmem:[%s792] sm:$0xff]
    %v794 = vld [vmem:[%s792 + $0x8] sm:$0xff]
    %v795 = vld [vmem:[%s792 + $0x10] sm:$0xff]
    %v796 = vld [vmem:[%s792 + $0x18] sm:$0xff]
    %v797 = vld [vmem:[%s792 + $0x20] sm:$0xff]
    %v798 = vld [vmem:[%s792 + $0x28] sm:$0xff]
    %v799 = vld [vmem:[%s792 + $0x30] sm:$0xff]
    %v800 = vld [vmem:[%s792 + $0x38] sm:$0xff]
    %v801 = vld [vmem:[%s792 + $0x40] sm:$0xff]
    %v802 = vld [vmem:[%s792 + $0x48] sm:$0xff]
    %v803 = vld [vmem:[%s792 + $0x50] sm:$0xff]
    %v804 = vld [vmem:[%s792 + $0x58] sm:$0xff]
    %v805 = vld [vmem:[%s792 + $0x60] sm:$0xff]
    %v806 = vld [vmem:[%s792 + $0x68] sm:$0xff]
    %v807 = vld [vmem:[%s792 + $0x70] sm:$0xff]
    %v808 = vld [vmem:[%s792 + $0x78] sm:$0xff]
    %v809 = vld [vmem:[%s792 + $0x80] sm:$0xff]
    %v810 = vld [vmem:[%s792 + $0x88] sm:$0xff]
    %v811 = vld [vmem:[%s792 + $0x90] sm:$0xff]
    %v812 = vld [vmem:[%s792 + $0x98] sm:$0xff]
    %v813 = vld [vmem:[%s792 + $0xa0] sm:$0xff]
    %v814 = vld [vmem:[%s792 + $0xa8] sm:$0xff]
    %v815 = vld [vmem:[%s792 + $0xb0] sm:$0xff]
    %v816 = vld [vmem:[%s792 + $0xb8] sm:$0xff]
    %v817 = vld [vmem:[%s792 + $0xc0] sm:$0xff]
    %v818 = vld [vmem:[%s792 + $0xc8] sm:$0xff]
    %v819 = vld [vmem:[%s792 + $0xd0] sm:$0xff]
    %v820 = vld [vmem:[%s792 + $0xd8] sm:$0xff]
    %v821 = vld [vmem:[%s792 + $0xe0] sm:$0xff]
    %v822 = vld [vmem:[%s792 + $0xe8] sm:$0xff]
    %v823 = vld [vmem:[%s792 + $0xf0] sm:$0xff]
    %v824 = vld [vmem:[%s792 + $0xf8] sm:$0xff]
    %vm829 = vcmask 1041408
    %v830 = vrot.slane %v788, 6
    %v831 = vrot.slane %v530, 6
    %v832 = vsel %vm829, %v830, %v831
    %v833 = vrot.slane %v789, 6
    %v834 = vrot.slane %v531, 6
    %v835 = vsel %vm829, %v833, %v834
    %v836 = vrot.slane %v790, 6
    %v837 = vsel %vm829, %v831, %v836
    %v838 = vrot.slane %v791, 6
    %v839 = vsel %vm829, %v834, %v838
    %844 = vmatpush.msra.mxu0 %v808
    %845 = vmatpush.msra.mxu0 %v807
    %846 = vmatpush.msra.mxu0 %v806
    %847 = vmatpush.msra.mxu0 %v805
    %848 = vmatpush.msra.mxu0 %v804
    %849 = vmatpush.msra.mxu0 %v803
    %850 = vmatpush.msra.mxu0 %v802
    %851 = vmatpush.msra.mxu0 %v801
    %852 = vmatpush.msra.mxu0 %v800
    %853 = vmatpush.msra.mxu0 %v799
    %854 = vmatpush.msra.mxu0 %v798
    %855 = vmatpush.msra.mxu0 %v797
    %856 = vmatpush.msra.mxu0 %v796
    %857 = vmatpush.msra.mxu0 %v795
    %858 = vmatpush.msra.mxu0 %v794
    %859 = vmatpush.msra.mxu0 %v793
    %860 = vmatmul.f32.gmra.mxu0 %v832
    %v861 = vpop.f32.mrf.mxu0
    %v862 = vadd.f32 0.0, %v861
    %863 = vmatmul.f32.gmra.mxu0 %v837
    %v864 = vpop.f32.mrf.mxu0
    %v865 = vadd.f32 0.0, %v864
    %866 = vdwg.mxu0
    %867 = vmatpush.msra.mxu0 %v824
    %868 = vmatpush.msra.mxu0 %v823
    %869 = vmatpush.msra.mxu0 %v822
    %870 = vmatpush.msra.mxu0 %v821
    %871 = vmatpush.msra.mxu0 %v820
    %872 = vmatpush.msra.mxu0 %v819
    %873 = vmatpush.msra.mxu0 %v818
    %874 = vmatpush.msra.mxu0 %v817
    %875 = vmatpush.msra.mxu0 %v816
    %876 = vmatpush.msra.mxu0 %v815
    %877 = vmatpush.msra.mxu0 %v814
    %878 = vmatpush.msra.mxu0 %v813
    %879 = vmatpush.msra.mxu0 %v812
    %880 = vmatpush.msra.mxu0 %v811
    %881 = vmatpush.msra.mxu0 %v810
    %882 = vmatpush.msra.mxu0 %v809
    %883 = vmatmul.f32.gmra.mxu0 %v835
    %v884 = vpop.f32.mrf.mxu0
    %v885 = vadd.f32 %v862, %v884
    %886 = vmatmul.f32.gmra.mxu0 %v839
    %v887 = vpop.f32.mrf.mxu0
    %v888 = vadd.f32 %v865, %v887
    %889 = vdwg.mxu0
    %v890 = vadd.f32 %v786, %v885
    %v891 = vadd.f32 %v787, %v888
    %v892 = vld [vmem:[#allocation2] sm:$0xf0]
    %v893 = vld [vmem:[#allocation2 + $0x8] sm:$0xf0]
    %v894 = vld [vmem:[#allocation2 + $0x20] sm:$0xf]
    %v895 = vld [vmem:[#allocation2 + $0x28] sm:$0xf]
    %s896 = scalar_lea.vmem %s2, 1024
    %v897 = vld [vmem:[%s896] sm:$0xff]
    %v898 = vld [vmem:[%s896 + $0x8] sm:$0xff]
    %v899 = vld [vmem:[%s896 + $0x10] sm:$0xff]
    %v900 = vld [vmem:[%s896 + $0x18] sm:$0xff]
    %v901 = vld [vmem:[%s896 + $0x20] sm:$0xff]
    %v902 = vld [vmem:[%s896 + $0x28] sm:$0xff]
    %v903 = vld [vmem:[%s896 + $0x30] sm:$0xff]
    %v904 = vld [vmem:[%s896 + $0x38] sm:$0xff]
    %v905 = vld [vmem:[%s896 + $0x40] sm:$0xff]
    %v906 = vld [vmem:[%s896 + $0x48] sm:$0xff]
    %v907 = vld [vmem:[%s896 + $0x50] sm:$0xff]
    %v908 = vld [vmem:[%s896 + $0x58] sm:$0xff]
    %v909 = vld [vmem:[%s896 + $0x60] sm:$0xff]
    %v910 = vld [vmem:[%s896 + $0x68] sm:$0xff]
    %v911 = vld [vmem:[%s896 + $0x70] sm:$0xff]
    %v912 = vld [vmem:[%s896 + $0x78] sm:$0xff]
    %v913 = vld [vmem:[%s896 + $0x80] sm:$0xff]
    %v914 = vld [vmem:[%s896 + $0x88] sm:$0xff]
    %v915 = vld [vmem:[%s896 + $0x90] sm:$0xff]
    %v916 = vld [vmem:[%s896 + $0x98] sm:$0xff]
    %v917 = vld [vmem:[%s896 + $0xa0] sm:$0xff]
    %v918 = vld [vmem:[%s896 + $0xa8] sm:$0xff]
    %v919 = vld [vmem:[%s896 + $0xb0] sm:$0xff]
    %v920 = vld [vmem:[%s896 + $0xb8] sm:$0xff]
    %v921 = vld [vmem:[%s896 + $0xc0] sm:$0xff]
    %v922 = vld [vmem:[%s896 + $0xc8] sm:$0xff]
    %v923 = vld [vmem:[%s896 + $0xd0] sm:$0xff]
    %v924 = vld [vmem:[%s896 + $0xd8] sm:$0xff]
    %v925 = vld [vmem:[%s896 + $0xe0] sm:$0xff]
    %v926 = vld [vmem:[%s896 + $0xe8] sm:$0xff]
    %v927 = vld [vmem:[%s896 + $0xf0] sm:$0xff]
    %v928 = vld [vmem:[%s896 + $0xf8] sm:$0xff]
    %v933 = vrot.slane %v892, 4
    %v934 = vrot.slane %v682, 4
    %v935 = vsel %vm573, %v933, %v934
    %v936 = vrot.slane %v893, 4
    %v937 = vrot.slane %v683, 4
    %v938 = vsel %vm573, %v936, %v937
    %v939 = vrot.slane %v894, 4
    %v940 = vsel %vm573, %v934, %v939
    %v941 = vrot.slane %v895, 4
    %v942 = vsel %vm573, %v937, %v941
    %947 = vmatpush.msra.mxu0 %v912
    %948 = vmatpush.msra.mxu0 %v911
    %949 = vmatpush.msra.mxu0 %v910
    %950 = vmatpush.msra.mxu0 %v909
    %951 = vmatpush.msra.mxu0 %v908
    %952 = vmatpush.msra.mxu0 %v907
    %953 = vmatpush.msra.mxu0 %v906
    %954 = vmatpush.msra.mxu0 %v905
    %955 = vmatpush.msra.mxu0 %v904
    %956 = vmatpush.msra.mxu0 %v903
    %957 = vmatpush.msra.mxu0 %v902
    %958 = vmatpush.msra.mxu0 %v901
    %959 = vmatpush.msra.mxu0 %v900
    %960 = vmatpush.msra.mxu0 %v899
    %961 = vmatpush.msra.mxu0 %v898
    %962 = vmatpush.msra.mxu0 %v897
    %963 = vmatmul.f32.gmra.mxu0 %v935
    %v964 = vpop.f32.mrf.mxu0
    %v965 = vadd.f32 0.0, %v964
    %966 = vmatmul.f32.gmra.mxu0 %v940
    %v967 = vpop.f32.mrf.mxu0
    %v968 = vadd.f32 0.0, %v967
    %969 = vdwg.mxu0
    %970 = vmatpush.msra.mxu0 %v928
    %971 = vmatpush.msra.mxu0 %v927
    %972 = vmatpush.msra.mxu0 %v926
    %973 = vmatpush.msra.mxu0 %v925
    %974 = vmatpush.msra.mxu0 %v924
    %975 = vmatpush.msra.mxu0 %v923
    %976 = vmatpush.msra.mxu0 %v922
    %977 = vmatpush.msra.mxu0 %v921
    %978 = vmatpush.msra.mxu0 %v920
    %979 = vmatpush.msra.mxu0 %v919
    %980 = vmatpush.msra.mxu0 %v918
    %981 = vmatpush.msra.mxu0 %v917
    %982 = vmatpush.msra.mxu0 %v916
    %983 = vmatpush.msra.mxu0 %v915
    %984 = vmatpush.msra.mxu0 %v914
    %985 = vmatpush.msra.mxu0 %v913
    %986 = vmatmul.f32.gmra.mxu0 %v938
    %v987 = vpop.f32.mrf.mxu0
    %v988 = vadd.f32 %v965, %v987
    %989 = vmatmul.f32.gmra.mxu0 %v942
    %v990 = vpop.f32.mrf.mxu0
    %v991 = vadd.f32 %v968, %v990
    %992 = vdwg.mxu0
    %v993 = vadd.f32 %v890, %v988
    %v994 = vadd.f32 %v891, %v991
    %v995 = vld [vmem:[%s6] sm:$0x1]
    %v997 = vperm.slane %v995, 0
    %v999 = vadd.f32 %v993, %v997
    %v1000 = vadd.f32 %v994, %v997
    %v1001 = vsub.f32 0.0, %v999
    %v1002 = vsub.f32 0.0, %v1000
    %v1003 = vmul.f32 %v1001, 1.442695
    %v1004 = vpow.pop %v1003
    %v1005 = vmul.f32 %v1002, 1.442695
    %v1006 = vpow.pop %v1005
    %v1007 = vadd.f32 %v1004, 1.0
    %v1008 = vadd.f32 %v1006, 1.0
    %v1009 = vrcp.pop %v1007
    %v1010 = vmul.f32 %v1007, %v1009
    %v1011 = vsub.f32 1.0, %v1010
    %v1012 = vmul.f32 %v1009, %v1011
    %v1013 = vadd.f32 %v1009, %v1012
    %vm1014 = vweird.f32 %v1007
    %vm1015 = vweird.f32 %v1009
    %vm1016 = vmor %vm1014, %vm1015
    %v1017 = vsel %vm1016, %v1009, %v1013
    %v1018 = vand.u32 2147483647, %v1007
    %vm1019 = vcmp.eq.f32.partialorder %v1018, 8.507059e+37
    %v1020 = vand.u32 %v1007, 2147483648
    %v1021 = vor.u32 1.1754944e-38, %v1020
    %v1022 = vsel %vm1019, %v1021, %v1017
    %v1023 = vmul.f32 1.0, %v1022
    %v1024 = vrcp.pop %v1008
    %v1025 = vmul.f32 %v1008, %v1024
    %v1026 = vsub.f32 1.0, %v1025
    %v1027 = vmul.f32 %v1024, %v1026
    %v1028 = vadd.f32 %v1024, %v1027
    %vm1029 = vweird.f32 %v1008
    %vm1030 = vweird.f32 %v1024
    %vm1031 = vmor %vm1029, %vm1030
    %v1032 = vsel %vm1031, %v1024, %v1028
    %v1033 = vand.u32 2147483647, %v1008
    %vm1034 = vcmp.eq.f32.partialorder %v1033, 8.507059e+37
    %v1035 = vand.u32 %v1008, 2147483648
    %v1036 = vor.u32 1.1754944e-38, %v1035
    %v1037 = vsel %vm1034, %v1036, %v1032
    %v1038 = vmul.f32 1.0, %v1037
    %vm1039 = vcmp.ge.s32.totalorder %v432, 4
    %vm1040 = vcmp.ge.s32.totalorder %v433, 4
    %vm1041 = vcmp.lt.s32.totalorder %v432, 12
    %vm1042 = vcmp.lt.s32.totalorder %v433, 12
    %vm1043 = vmand %vm1039, %vm1041
    %vm1044 = vmand %vm1040, %vm1042
    %v1045 = vsel %vm1043, %v1023, 0.0
    %v1046 = vsel %vm1044, %v1038, 0.0
    %1047 = vst [vmem:[#allocation3] sm:$0xff] %v1045
    %1048 = vst [vmem:[#allocation3 + $0x8] sm:$0xff] %v1046
    %v1049 = vld [vmem:[#allocation3] sm:$0xff]
    %v1050 = vld [vmem:[%s3] sm:$0xff]
    %v1051 = vld [vmem:[%s3 + $0x8] sm:$0xff]
    %v1052 = vld [vmem:[%s3 + $0x10] sm:$0xff]
    %v1053 = vld [vmem:[%s3 + $0x18] sm:$0xff]
    %v1054 = vld [vmem:[%s3 + $0x20] sm:$0xff]
    %v1055 = vld [vmem:[%s3 + $0x28] sm:$0xff]
    %v1056 = vld [vmem:[%s3 + $0x30] sm:$0xff]
    %v1057 = vld [vmem:[%s3 + $0x38] sm:$0xff]
    %v1058 = vld [vmem:[%s3 + $0x40] sm:$0xff]
    %v1059 = vld [vmem:[%s3 + $0x48] sm:$0xff]
    %v1060 = vld [vmem:[%s3 + $0x50] sm:$0xff]
    %v1061 = vld [vmem:[%s3 + $0x58] sm:$0xff]
    %v1062 = vld [vmem:[%s3 + $0x60] sm:$0xff]
    %v1063 = vld [vmem:[%s3 + $0x68] sm:$0xff]
    %v1064 = vld [vmem:[%s3 + $0x70] sm:$0xff]
    %v1065 = vld [vmem:[%s3 + $0x78] sm:$0xff]
    %v1066 = vld [vmem:[#allocation3 + $0x2] sm:$0xff]
    %s1067 = scalar_lea.vmem %s3, 128
    %v1068 = vld [vmem:[%s1067] sm:$0xff]
    %v1069 = vld [vmem:[%s1067 + $0x8] sm:$0xff]
    %v1070 = vld [vmem:[%s1067 + $0x10] sm:$0xff]
    %v1071 = vld [vmem:[%s1067 + $0x18] sm:$0xff]
    %v1072 = vld [vmem:[%s1067 + $0x20] sm:$0xff]
    %v1073 = vld [vmem:[%s1067 + $0x28] sm:$0xff]
    %v1074 = vld [vmem:[%s1067 + $0x30] sm:$0xff]
    %v1075 = vld [vmem:[%s1067 + $0x38] sm:$0xff]
    %v1076 = vld [vmem:[%s1067 + $0x40] sm:$0xff]
    %v1077 = vld [vmem:[%s1067 + $0x48] sm:$0xff]
    %v1078 = vld [vmem:[%s1067 + $0x50] sm:$0xff]
    %v1079 = vld [vmem:[%s1067 + $0x58] sm:$0xff]
    %v1080 = vld [vmem:[%s1067 + $0x60] sm:$0xff]
    %v1081 = vld [vmem:[%s1067 + $0x68] sm:$0xff]
    %v1082 = vld [vmem:[%s1067 + $0x70] sm:$0xff]
    %v1083 = vld [vmem:[%s1067 + $0x78] sm:$0xff]
    %1084 = vmatpush.msra.mxu0 %v1083
    %1085 = vmatpush.msra.mxu0 %v1082
    %1086 = vmatpush.msra.mxu0 %v1081
    %1087 = vmatpush.msra.mxu0 %v1080
    %1088 = vmatpush.msra.mxu0 %v1079
    %1089 = vmatpush.msra.mxu0 %v1078
    %1090 = vmatpush.msra.mxu0 %v1077
    %1091 = vmatpush.msra.mxu0 %v1076
    %1092 = vmatpush.msra.mxu0 %v1075
    %1093 = vmatpush.msra.mxu0 %v1074
    %1094 = vmatpush.msra.mxu0 %v1073
    %1095 = vmatpush.msra.mxu0 %v1072
    %1096 = vmatpush.msra.mxu0 %v1071
    %1097 = vmatpush.msra.mxu0 %v1070
    %1098 = vmatpush.msra.mxu0 %v1069
    %1099 = vmatpush.msra.mxu0 %v1068
    %1100 = vmatmul.f32.gmra.mxu0 %v1066
    %v1101 = vpop.f32.mrf.mxu0
    %v1102 = vadd.f32 0.0, %v1101
    %1103 = vdwg.mxu0
    %1104 = vmatpush.msra.mxu0 %v1065
    %1105 = vmatpush.msra.mxu0 %v1064
    %1106 = vmatpush.msra.mxu0 %v1063
    %1107 = vmatpush.msra.mxu0 %v1062
    %1108 = vmatpush.msra.mxu0 %v1061
    %1109 = vmatpush.msra.mxu0 %v1060
    %1110 = vmatpush.msra.mxu0 %v1059
    %1111 = vmatpush.msra.mxu0 %v1058
    %1112 = vmatpush.msra.mxu0 %v1057
    %1113 = vmatpush.msra.mxu0 %v1056
    %1114 = vmatpush.msra.mxu0 %v1055
    %1115 = vmatpush.msra.mxu0 %v1054
    %1116 = vmatpush.msra.mxu0 %v1053
    %1117 = vmatpush.msra.mxu0 %v1052
    %1118 = vmatpush.msra.mxu0 %v1051
    %1119 = vmatpush.msra.mxu0 %v1050
    %1120 = vmatmul.f32.gmra.mxu0 %v1049
    %v1121 = vpop.f32.mrf.mxu0
    %v1122 = vadd.f32 %v1102, %v1121
    %1123 = vdwg.mxu0
    %v1124 = vld [vmem:[#allocation3 + $0x4] sm:$0xff]
    %s1125 = scalar_lea.vmem %s3, 256
    %v1126 = vld [vmem:[%s1125] sm:$0xff]
    %v1127 = vld [vmem:[%s1125 + $0x8] sm:$0xff]
    %v1128 = vld [vmem:[%s1125 + $0x10] sm:$0xff]
    %v1129 = vld [vmem:[%s1125 + $0x18] sm:$0xff]
    %v1130 = vld [vmem:[%s1125 + $0x20] sm:$0xff]
    %v1131 = vld [vmem:[%s1125 + $0x28] sm:$0xff]
    %v1132 = vld [vmem:[%s1125 + $0x30] sm:$0xff]
    %v1133 = vld [vmem:[%s1125 + $0x38] sm:$0xff]
    %v1134 = vld [vmem:[%s1125 + $0x40] sm:$0xff]
    %v1135 = vld [vmem:[%s1125 + $0x48] sm:$0xff]
    %v1136 = vld [vmem:[%s1125 + $0x50] sm:$0xff]
    %v1137 = vld [vmem:[%s1125 + $0x58] sm:$0xff]
    %v1138 = vld [vmem:[%s1125 + $0x60] sm:$0xff]
    %v1139 = vld [vmem:[%s1125 + $0x68] sm:$0xff]
    %v1140 = vld [vmem:[%s1125 + $0x70] sm:$0xff]
    %v1141 = vld [vmem:[%s1125 + $0x78] sm:$0xff]
    %1142 = vmatpush.msra.mxu0 %v1141
    %1143 = vmatpush.msra.mxu0 %v1140
    %1144 = vmatpush.msra.mxu0 %v1139
    %1145 = vmatpush.msra.mxu0 %v1138
    %1146 = vmatpush.msra.mxu0 %v1137
    %1147 = vmatpush.msra.mxu0 %v1136
    %1148 = vmatpush.msra.mxu0 %v1135
    %1149 = vmatpush.msra.mxu0 %v1134
    %1150 = vmatpush.msra.mxu0 %v1133
    %1151 = vmatpush.msra.mxu0 %v1132
    %1152 = vmatpush.msra.mxu0 %v1131
    %1153 = vmatpush.msra.mxu0 %v1130
    %1154 = vmatpush.msra.mxu0 %v1129
    %1155 = vmatpush.msra.mxu0 %v1128
    %1156 = vmatpush.msra.mxu0 %v1127
    %1157 = vmatpush.msra.mxu0 %v1126
    %1158 = vmatmul.f32.gmra.mxu0 %v1124
    %v1159 = vpop.f32.mrf.mxu0
    %v1160 = vadd.f32 0.0, %v1159
    %1161 = vdwg.mxu0
    %v1162 = vadd.f32 %v1122, %v1160
    %v1163 = vld [vmem:[#allocation3 + $0x6] sm:$0xff]
    %s1164 = scalar_lea.vmem %s3, 384
    %v1165 = vld [vmem:[%s1164] sm:$0xff]
    %v1166 = vld [vmem:[%s1164 + $0x8] sm:$0xff]
    %v1167 = vld [vmem:[%s1164 + $0x10] sm:$0xff]
    %v1168 = vld [vmem:[%s1164 + $0x18] sm:$0xff]
    %v1169 = vld [vmem:[%s1164 + $0x20] sm:$0xff]
    %v1170 = vld [vmem:[%s1164 + $0x28] sm:$0xff]
    %v1171 = vld [vmem:[%s1164 + $0x30] sm:$0xff]
    %v1172 = vld [vmem:[%s1164 + $0x38] sm:$0xff]
    %v1173 = vld [vmem:[%s1164 + $0x40] sm:$0xff]
    %v1174 = vld [vmem:[%s1164 + $0x48] sm:$0xff]
    %v1175 = vld [vmem:[%s1164 + $0x50] sm:$0xff]
    %v1176 = vld [vmem:[%s1164 + $0x58] sm:$0xff]
    %v1177 = vld [vmem:[%s1164 + $0x60] sm:$0xff]
    %v1178 = vld [vmem:[%s1164 + $0x68] sm:$0xff]
    %v1179 = vld [vmem:[%s1164 + $0x70] sm:$0xff]
    %v1180 = vld [vmem:[%s1164 + $0x78] sm:$0xff]
    %1181 = vmatpush.msra.mxu0 %v1180
    %1182 = vmatpush.msra.mxu0 %v1179
    %1183 = vmatpush.msra.mxu0 %v1178
    %1184 = vmatpush.msra.mxu0 %v1177
    %1185 = vmatpush.msra.mxu0 %v1176
    %1186 = vmatpush.msra.mxu0 %v1175
    %1187 = vmatpush.msra.mxu0 %v1174
    %1188 = vmatpush.msra.mxu0 %v1173
    %1189 = vmatpush.msra.mxu0 %v1172
    %1190 = vmatpush.msra.mxu0 %v1171
    %1191 = vmatpush.msra.mxu0 %v1170
    %1192 = vmatpush.msra.mxu0 %v1169
    %1193 = vmatpush.msra.mxu0 %v1168
    %1194 = vmatpush.msra.mxu0 %v1167
    %1195 = vmatpush.msra.mxu0 %v1166
    %1196 = vmatpush.msra.mxu0 %v1165
    %1197 = vmatmul.f32.gmra.mxu0 %v1163
    %v1198 = vpop.f32.mrf.mxu0
    %v1199 = vadd.f32 0.0, %v1198
    %1200 = vdwg.mxu0
    %v1201 = vadd.f32 %v1162, %v1199
    %v1202 = vld [vmem:[#allocation3 + $0x8] sm:$0xff]
    %s1203 = scalar_lea.vmem %s3, 512
    %v1204 = vld [vmem:[%s1203] sm:$0xff]
    %v1205 = vld [vmem:[%s1203 + $0x8] sm:$0xff]
    %v1206 = vld [vmem:[%s1203 + $0x10] sm:$0xff]
    %v1207 = vld [vmem:[%s1203 + $0x18] sm:$0xff]
    %v1208 = vld [vmem:[%s1203 + $0x20] sm:$0xff]
    %v1209 = vld [vmem:[%s1203 + $0x28] sm:$0xff]
    %v1210 = vld [vmem:[%s1203 + $0x30] sm:$0xff]
    %v1211 = vld [vmem:[%s1203 + $0x38] sm:$0xff]
    %v1212 = vld [vmem:[%s1203 + $0x40] sm:$0xff]
    %v1213 = vld [vmem:[%s1203 + $0x48] sm:$0xff]
    %v1214 = vld [vmem:[%s1203 + $0x50] sm:$0xff]
    %v1215 = vld [vmem:[%s1203 + $0x58] sm:$0xff]
    %v1216 = vld [vmem:[%s1203 + $0x60] sm:$0xff]
    %v1217 = vld [vmem:[%s1203 + $0x68] sm:$0xff]
    %v1218 = vld [vmem:[%s1203 + $0x70] sm:$0xff]
    %v1219 = vld [vmem:[%s1203 + $0x78] sm:$0xff]
    %1220 = vmatpush.msra.mxu0 %v1219
    %1221 = vmatpush.msra.mxu0 %v1218
    %1222 = vmatpush.msra.mxu0 %v1217
    %1223 = vmatpush.msra.mxu0 %v1216
    %1224 = vmatpush.msra.mxu0 %v1215
    %1225 = vmatpush.msra.mxu0 %v1214
    %1226 = vmatpush.msra.mxu0 %v1213
    %1227 = vmatpush.msra.mxu0 %v1212
    %1228 = vmatpush.msra.mxu0 %v1211
    %1229 = vmatpush.msra.mxu0 %v1210
    %1230 = vmatpush.msra.mxu0 %v1209
    %1231 = vmatpush.msra.mxu0 %v1208
    %1232 = vmatpush.msra.mxu0 %v1207
    %1233 = vmatpush.msra.mxu0 %v1206
    %1234 = vmatpush.msra.mxu0 %v1205
    %1235 = vmatpush.msra.mxu0 %v1204
    %1236 = vmatmul.f32.gmra.mxu0 %v1202
    %v1237 = vpop.f32.mrf.mxu0
    %v1238 = vadd.f32 0.0, %v1237
    %1239 = vdwg.mxu0
    %v1240 = vadd.f32 %v1201, %v1238
    %v1241 = vld [vmem:[%s7] sm:$0x1]
    %v1243 = vperm.slane %v1241, 0
    %v1245 = vadd.f32 %v1240, %v1243
    %v1246 = vsub.f32 0.0, %v1245
    %v1247 = vmul.f32 %v1246, 1.442695
    %v1248 = vpow.pop %v1247
    %v1249 = vadd.f32 %v1248, 1.0
    %v1250 = vrcp.pop %v1249
    %v1251 = vmul.f32 %v1249, %v1250
    %v1252 = vsub.f32 1.0, %v1251
    %v1253 = vmul.f32 %v1250, %v1252
    %v1254 = vadd.f32 %v1250, %v1253
    %vm1255 = vweird.f32 %v1249
    %vm1256 = vweird.f32 %v1250
    %vm1257 = vmor %vm1255, %vm1256
    %v1258 = vsel %vm1257, %v1250, %v1254
    %v1259 = vand.u32 2147483647, %v1249
    %vm1260 = vcmp.eq.f32.partialorder %v1259, 8.507059e+37
    %v1261 = vand.u32 %v1249, 2147483648
    %v1262 = vor.u32 1.1754944e-38, %v1261
    %v1263 = vsel %vm1260, %v1262, %v1258
    %v1264 = vmul.f32 1.0, %v1263
    %1265 = vst [vmem:[#allocation4] sm:$0xff] %v1264
    %v1266 = vld [vmem:[#allocation4] sm:$0x3]
    %v1267 = vld [vmem:[%s4] sm:$0xff]
    %v1268 = vld [vmem:[%s4 + $0x8] sm:$0xff]
    %v1269 = vld [vmem:[%s4 + $0x10] sm:$0xff]
    %v1270 = vld [vmem:[%s4 + $0x18] sm:$0xff]
    %v1271 = vld [vmem:[%s4 + $0x20] sm:$0xff]
    %v1272 = vld [vmem:[%s4 + $0x28] sm:$0xff]
    %v1273 = vld [vmem:[%s4 + $0x30] sm:$0xff]
    %v1274 = vld [vmem:[%s4 + $0x38] sm:$0xff]
    %v1275 = vld [vmem:[%s4 + $0x40] sm:$0xff]
    %v1276 = vld [vmem:[%s4 + $0x48] sm:$0xff]
    %v1277 = vld [vmem:[%s4 + $0x50] sm:$0xff]
    %v1278 = vld [vmem:[%s4 + $0x58] sm:$0xff]
    %v1279 = vld [vmem:[%s4 + $0x60] sm:$0xff]
    %v1280 = vld [vmem:[%s4 + $0x68] sm:$0xff]
    %v1281 = vld [vmem:[%s4 + $0x70] sm:$0xff]
    %v1282 = vld [vmem:[%s4 + $0x78] sm:$0xff]
    %v1283 = vld [vmem:[#allocation4 + $0x2] sm:$0x3]
    %s1284 = scalar_lea.vmem %s4, 128
    %v1285 = vld [vmem:[%s1284] sm:$0xff]
    %v1286 = vld [vmem:[%s1284 + $0x8] sm:$0xff]
    %v1287 = vld [vmem:[%s1284 + $0x10] sm:$0xff]
    %v1288 = vld [vmem:[%s1284 + $0x18] sm:$0xff]
    %v1289 = vld [vmem:[%s1284 + $0x20] sm:$0xff]
    %v1290 = vld [vmem:[%s1284 + $0x28] sm:$0xff]
    %v1291 = vld [vmem:[%s1284 + $0x30] sm:$0xff]
    %v1292 = vld [vmem:[%s1284 + $0x38] sm:$0xff]
    %v1293 = vld [vmem:[%s1284 + $0x40] sm:$0xff]
    %v1294 = vld [vmem:[%s1284 + $0x48] sm:$0xff]
    %v1295 = vld [vmem:[%s1284 + $0x50] sm:$0xff]
    %v1296 = vld [vmem:[%s1284 + $0x58] sm:$0xff]
    %v1297 = vld [vmem:[%s1284 + $0x60] sm:$0xff]
    %v1298 = vld [vmem:[%s1284 + $0x68] sm:$0xff]
    %v1299 = vld [vmem:[%s1284 + $0x70] sm:$0xff]
    %v1300 = vld [vmem:[%s1284 + $0x78] sm:$0xff]
    %1301 = vmatpush.msra.mxu0 %v1300
    %1302 = vmatpush.msra.mxu0 %v1299
    %1303 = vmatpush.msra.mxu0 %v1298
    %1304 = vmatpush.msra.mxu0 %v1297
    %1305 = vmatpush.msra.mxu0 %v1296
    %1306 = vmatpush.msra.mxu0 %v1295
    %1307 = vmatpush.msra.mxu0 %v1294
    %1308 = vmatpush.msra.mxu0 %v1293
    %1309 = vmatpush.msra.mxu0 %v1292
    %1310 = vmatpush.msra.mxu0 %v1291
    %1311 = vmatpush.msra.mxu0 %v1290
    %1312 = vmatpush.msra.mxu0 %v1289
    %1313 = vmatpush.msra.mxu0 %v1288
    %1314 = vmatpush.msra.mxu0 %v1287
    %1315 = vmatpush.msra.mxu0 %v1286
    %1316 = vmatpush.msra.mxu0 %v1285
    %1317 = vmatmul.f32.gmra.mxu0 %v1283
    %v1318 = vpop.f32.mrf.mxu0
    %v1319 = vadd.f32 0.0, %v1318
    %1320 = vdwg.mxu0
    %1321 = vmatpush.msra.mxu0 %v1282
    %1322 = vmatpush.msra.mxu0 %v1281
    %1323 = vmatpush.msra.mxu0 %v1280
    %1324 = vmatpush.msra.mxu0 %v1279
    %1325 = vmatpush.msra.mxu0 %v1278
    %1326 = vmatpush.msra.mxu0 %v1277
    %1327 = vmatpush.msra.mxu0 %v1276
    %1328 = vmatpush.msra.mxu0 %v1275
    %1329 = vmatpush.msra.mxu0 %v1274
    %1330 = vmatpush.msra.mxu0 %v1273
    %1331 = vmatpush.msra.mxu0 %v1272
    %1332 = vmatpush.msra.mxu0 %v1271
    %1333 = vmatpush.msra.mxu0 %v1270
    %1334 = vmatpush.msra.mxu0 %v1269
    %1335 = vmatpush.msra.mxu0 %v1268
    %1336 = vmatpush.msra.mxu0 %v1267
    %1337 = vmatmul.f32.gmra.mxu0 %v1266
    %v1338 = vpop.f32.mrf.mxu0
    %v1339 = vadd.f32 %v1319, %v1338
    %1340 = vdwg.mxu0
    %v1341 = vld [vmem:[#allocation4 + $0x4] sm:$0x3]
    %s1342 = scalar_lea.vmem %s4, 256
    %v1343 = vld [vmem:[%s1342] sm:$0xff]
    %v1344 = vld [vmem:[%s1342 + $0x8] sm:$0xff]
    %v1345 = vld [vmem:[%s1342 + $0x10] sm:$0xff]
    %v1346 = vld [vmem:[%s1342 + $0x18] sm:$0xff]
    %v1347 = vld [vmem:[%s1342 + $0x20] sm:$0xff]
    %v1348 = vld [vmem:[%s1342 + $0x28] sm:$0xff]
    %v1349 = vld [vmem:[%s1342 + $0x30] sm:$0xff]
    %v1350 = vld [vmem:[%s1342 + $0x38] sm:$0xff]
    %v1351 = vld [vmem:[%s1342 + $0x40] sm:$0xff]
    %v1352 = vld [vmem:[%s1342 + $0x48] sm:$0xff]
    %v1353 = vld [vmem:[%s1342 + $0x50] sm:$0xff]
    %v1354 = vld [vmem:[%s1342 + $0x58] sm:$0xff]
    %v1355 = vld [vmem:[%s1342 + $0x60] sm:$0xff]
    %v1356 = vld [vmem:[%s1342 + $0x68] sm:$0xff]
    %v1357 = vld [vmem:[%s1342 + $0x70] sm:$0xff]
    %v1358 = vld [vmem:[%s1342 + $0x78] sm:$0xff]
    %1359 = vmatpush.msra.mxu0 %v1358
    %1360 = vmatpush.msra.mxu0 %v1357
    %1361 = vmatpush.msra.mxu0 %v1356
    %1362 = vmatpush.msra.mxu0 %v1355
    %1363 = vmatpush.msra.mxu0 %v1354
    %1364 = vmatpush.msra.mxu0 %v1353
    %1365 = vmatpush.msra.mxu0 %v1352
    %1366 = vmatpush.msra.mxu0 %v1351
    %1367 = vmatpush.msra.mxu0 %v1350
    %1368 = vmatpush.msra.mxu0 %v1349
    %1369 = vmatpush.msra.mxu0 %v1348
    %1370 = vmatpush.msra.mxu0 %v1347
    %1371 = vmatpush.msra.mxu0 %v1346
    %1372 = vmatpush.msra.mxu0 %v1345
    %1373 = vmatpush.msra.mxu0 %v1344
    %1374 = vmatpush.msra.mxu0 %v1343
    %1375 = vmatmul.f32.gmra.mxu0 %v1341
    %v1376 = vpop.f32.mrf.mxu0
    %v1377 = vadd.f32 0.0, %v1376
    %1378 = vdwg.mxu0
    %v1379 = vadd.f32 %v1339, %v1377
    %v1380 = vld [vmem:[#allocation4 + $0x6] sm:$0x3]
    %s1381 = scalar_lea.vmem %s4, 384
    %v1382 = vld [vmem:[%s1381] sm:$0xff]
    %v1383 = vld [vmem:[%s1381 + $0x8] sm:$0xff]
    %v1384 = vld [vmem:[%s1381 + $0x10] sm:$0xff]
    %v1385 = vld [vmem:[%s1381 + $0x18] sm:$0xff]
    %v1386 = vld [vmem:[%s1381 + $0x20] sm:$0xff]
    %v1387 = vld [vmem:[%s1381 + $0x28] sm:$0xff]
    %v1388 = vld [vmem:[%s1381 + $0x30] sm:$0xff]
    %v1389 = vld [vmem:[%s1381 + $0x38] sm:$0xff]
    %v1390 = vld [vmem:[%s1381 + $0x40] sm:$0xff]
    %v1391 = vld [vmem:[%s1381 + $0x48] sm:$0xff]
    %v1392 = vld [vmem:[%s1381 + $0x50] sm:$0xff]
    %v1393 = vld [vmem:[%s1381 + $0x58] sm:$0xff]
    %v1394 = vld [vmem:[%s1381 + $0x60] sm:$0xff]
    %v1395 = vld [vmem:[%s1381 + $0x68] sm:$0xff]
    %v1396 = vld [vmem:[%s1381 + $0x70] sm:$0xff]
    %v1397 = vld [vmem:[%s1381 + $0x78] sm:$0xff]
    %1398 = vmatpush.msra.mxu0 %v1397
    %1399 = vmatpush.msra.mxu0 %v1396
    %1400 = vmatpush.msra.mxu0 %v1395
    %1401 = vmatpush.msra.mxu0 %v1394
    %1402 = vmatpush.msra.mxu0 %v1393
    %1403 = vmatpush.msra.mxu0 %v1392
    %1404 = vmatpush.msra.mxu0 %v1391
    %1405 = vmatpush.msra.mxu0 %v1390
    %1406 = vmatpush.msra.mxu0 %v1389
    %1407 = vmatpush.msra.mxu0 %v1388
    %1408 = vmatpush.msra.mxu0 %v1387
    %1409 = vmatpush.msra.mxu0 %v1386
    %1410 = vmatpush.msra.mxu0 %v1385
    %1411 = vmatpush.msra.mxu0 %v1384
    %1412 = vmatpush.msra.mxu0 %v1383
    %1413 = vmatpush.msra.mxu0 %v1382
    %1414 = vmatmul.f32.gmra.mxu0 %v1380
    %v1415 = vpop.f32.mrf.mxu0
    %v1416 = vadd.f32 0.0, %v1415
    %1417 = vdwg.mxu0
    %v1418 = vadd.f32 %v1379, %v1416
    %v1419 = vld [vmem:[%s8] sm:$0x1]
    %v1421 = vperm.slane %v1419, 0
    %v1423 = vadd.f32 %v1418, %v1421
    %1424 = vst [vmem:[#allocation5] sm:$0x3] %v1423
    // Predicated region
    $region38: #{lenet_forward.1} parent=1 // pred_check
      _
    $region39: #{lenet_forward.1} parent=1 // pred_check_branch
      %1426 = sbr.rel (0) target = $region41
    $region40: #{lenet_forward.1} parent=1 // pred_region
      %1428 = vsyncadd [#allocation6], 0
      %s1430 = sshll.u32 [#allocation5], 4
      %s1431 = int_to_ptr.vmem [resolvable:$true] %s1430
      %s1432 = sshll.u32 %s9, 4
      %s1433 = int_to_ptr.hbm [resolvable:$true] %s1432
      %1435 = dma.vmem_to_hbm [thread:$0]  %s1431, 32, %s1433, [#allocation6]
    $region41: #{lenet_forward.1} parent=1 // pred_fallthru
      _
    // Predicated region
    $region42: #{lenet_forward.1} parent=1 // pred_check
      _
    $region43: #{lenet_forward.1} parent=1 // pred_check_branch
      %1437 = sbr.rel (0) target = $region45
    $region44: #{lenet_forward.1} parent=1 // pred_region
      %1439 = dma.done [#allocation6], 32
    $region45: #{lenet_forward.1} parent=1 // pred_fallthru
      _
    %1440 = vsyncpa [#allocation6], 1

</llo_original>
